<compile_context>
chip_gen: v7x
topology: tpu7x:2x2x1
jax: 0.10.0
libtpu: 0.0.40
codegen_flags: <defaults>
</compile_context>

<pallas_src>
import functools

import jax
import jax.numpy as jnp
from jax import lax
from jax.experimental import pallas as pl
from jax.experimental.pallas import tpu as pltpu

KH = KW = 3
C_IN = 3
C_MID = 16
C_OUT = 3

# Reference runs at full f32 precision; the kernel's MXU dots accumulate in f32 via
# preferred_element_type. The test tolerance below allows for bf16-class MXU input rounding.
_REF_PRECISION = lax.Precision.HIGHEST


def _shift_flat(v, s, col_mask):
    """out[:, p] = v[:, p + s], zero-filled where p + s falls outside [0, P).

    col_mask (shape (1, P), values 0/1) additionally zeroes output columns whose horizontal source
    pixel is out of range (kills the row wrap-around of the flattened shift). May be None.
    """
    c, p_total = v.shape
    if s > 0:
        u = jnp.concatenate([v[:, s:], jnp.zeros((c, s), v.dtype)], axis=1)
    elif s < 0:
        u = jnp.concatenate([jnp.zeros((c, -s), v.dtype), v[:, : p_total + s]], axis=1)
    else:
        u = v
    if col_mask is not None:
        u = u * col_mask
    return u


def _conv3x3_same(v, w_all, b_col, width, mask_left, mask_right):
    """3x3 stride-1 'same' convolution on a planar, spatially-flattened activation.

    v:          (Cin, H*W) f32 value
    w_all:      (9, Cout, Cin) per-tap weight matrices, tap index t = ky*3 + kx
    b_col:      (Cout, 1) bias
    mask_left:  (1, H*W) zero where x == 0       (taps with dx = -1)
    mask_right: (1, H*W) zero where x == W - 1   (taps with dx = +1)
    returns:    (Cout, H*W) f32
    """
    c_out = w_all.shape[1]
    p_total = v.shape[1]
    acc = jnp.broadcast_to(b_col, (c_out, p_total))            # bias folded into the init
    for ky in range(KH):
        for kx in range(KW):
            dy, dx = ky - 1, kx - 1
            mask = mask_left if dx == -1 else (mask_right if dx == 1 else None)
            shifted = _shift_flat(v, dy * width + dx, mask)     # (Cin, P)
            w_tap = w_all[ky * KW + kx]                         # (Cout, Cin)
            acc = acc + jnp.dot(w_tap, shifted,                 # contraction on the MXU
                                preferred_element_type=jnp.float32)
    return acc


def _denoise_kernel(x_ref, w1_ref, b1_ref, w2_ref, b2_ref, masks_ref, o_ref, *, width):
    # x_ref:     (1, C_IN, H*W)  one image, planar + spatially flattened (lane dim = H*W)
    # w1_ref:    (9, C_MID, C_IN)
    # b1_ref:    (C_MID, 1)
    # w2_ref:    (9, C_OUT, C_MID)
    # b2_ref:    (C_OUT, 1)
    # masks_ref: (2, H*W)  row 0: mask for dx = -1 taps, row 1: mask for dx = +1 taps
    # o_ref:     (1, C_OUT, H*W)
    mask_left = masks_ref[0:1, :]
    mask_right = masks_ref[1:2, :]
    w1 = w1_ref[...]
    b1 = b1_ref[...]
    w2 = w2_ref[...]
    b2 = b2_ref[...]

    x = x_ref[0].astype(jnp.float32)                                       # (C_IN, P)
    h = _conv3x3_same(x, w1, b1, width, mask_left, mask_right)             # (C_MID, P)
    h = jnp.maximum(h, 0.0)                                                # ReLU
    y = _conv3x3_same(h, w2, b2, width, mask_left, mask_right)             # (C_OUT, P)
    o_ref[0] = y.astype(o_ref.dtype)


def simple_denoise_cnn(x_nchw, w1, b1, w2, b2):
    """Forward pass of SimpleDenoiseCNN.

    x_nchw: (N, 3, H, W) float32 (PyTorch NCHW convention)
    w1: (3, 3, 3, 16) HWIO, b1: (16,)
    w2: (3, 3, 16, 3) HWIO, b2: (3,)
    returns: (N, 3, H, W) float32
    """
    N, C, H, W = x_nchw.shape
    assert C == C_IN
    P = H * W

    # Free reshapes only -- no HBM transpose or pad round trips.
    x_flat = x_nchw.reshape(N, C_IN, P)

    # Per-tap weight matrices: w_k[t, o, ci] = w_hwio[ky, kx, ci, o], t = ky*3 + kx.
    w1k = jnp.transpose(w1, (0, 1, 3, 2)).reshape(KH * KW, C_MID, C_IN).astype(jnp.float32)
    w2k = jnp.transpose(w2, (0, 1, 3, 2)).reshape(KH * KW, C_OUT, C_MID).astype(jnp.float32)
    b1c = b1.reshape(C_MID, 1).astype(jnp.float32)
    b2c = b2.reshape(C_OUT, 1).astype(jnp.float32)

    # Column-validity masks for the horizontal taps (tiny; constant index_map -> fetched once).
    col = jnp.arange(P, dtype=jnp.int32) % W
    masks = jnp.stack([(col != 0).astype(jnp.float32),        # dx = -1: output column x == 0 invalid
                       (col != W - 1).astype(jnp.float32)])   # dx = +1: output column x == W-1 invalid

    kernel = functools.partial(_denoise_kernel, width=W)

    # Rough per-image VMEM need (f32): double-buffered in/out slabs + conv activations / shifts.
    est_vmem_bytes = P * 4 * (2 * C_IN + 2 * C_OUT + 4 * C_MID)
    cp_kwargs = dict(dimension_semantics=("parallel",))
    if est_vmem_bytes > 16 * 1024 * 1024:
        # Raise the scoped-VMEM default (16 MiB on v5e, 32 MiB on v6e/v7x) for large images.
        cp_kwargs["vmem_limit_bytes"] = int(min(est_vmem_bytes, 100 * 1024 * 1024))

    out_flat = pl.pallas_call(
        kernel,
        out_shape=jax.ShapeDtypeStruct((N, C_OUT, P), x_nchw.dtype),
        grid_spec=pltpu.PrefetchScalarGridSpec(
            num_scalar_prefetch=0,
            grid=(N,),
            in_specs=[
                pl.BlockSpec((1, C_IN, P), lambda n: (n, 0, 0)),
                pl.BlockSpec((KH * KW, C_MID, C_IN), lambda n: (0, 0, 0)),
                pl.BlockSpec((C_MID, 1), lambda n: (0, 0)),
                pl.BlockSpec((KH * KW, C_OUT, C_MID), lambda n: (0, 0, 0)),
                pl.BlockSpec((C_OUT, 1), lambda n: (0, 0)),
                pl.BlockSpec((2, P), lambda n: (0, 0)),
            ],
            out_specs=pl.BlockSpec((1, C_OUT, P), lambda n: (n, 0, 0)),
        ),
        compiler_params=pltpu.CompilerParams(**cp_kwargs),
    )(x_flat, w1k, b1c, w2k, b2c, masks)

    return out_flat.reshape(N, C_OUT, H, W)


def _reference(x_nchw, w1, b1, w2, b2):
    """Pure-JAX reference (lax.conv, matches PyTorch Conv2d padding=1) at full f32 precision."""
    dn = lax.conv_dimension_numbers(x_nchw.shape, w1.shape, ("NCHW", "HWIO", "NCHW"))
    y = lax.conv_general_dilated(x_nchw, w1, (1, 1), "SAME", dimension_numbers=dn,
                                 precision=_REF_PRECISION)
    y = jnp.maximum(y + b1.reshape(1, C_MID, 1, 1), 0.0)
    dn2 = lax.conv_dimension_numbers(y.shape, w2.shape, ("NCHW", "HWIO", "NCHW"))
    z = lax.conv_general_dilated(y, w2, (1, 1), "SAME", dimension_numbers=dn2,
                                 precision=_REF_PRECISION)
    return z + b2.reshape(1, C_OUT, 1, 1)


if __name__ == "__main__":
    key = jax.random.PRNGKey(0)
    k_in, kw1, kb1, kw2, kb2 = jax.random.split(key, 5)

    N, H, W = 2, 16, 16
    x = jax.random.normal(k_in, (N, C_IN, H, W), dtype=jnp.float32)

    # Deterministic synthetic parameters (HWIO layout; same tensor sizes as the PyTorch module).
    w1 = 0.1 * jax.random.normal(kw1, (KH, KW, C_IN, C_MID), dtype=jnp.float32)
    b1 = 0.1 * jax.random.normal(kb1, (C_MID,), dtype=jnp.float32)
    w2 = 0.1 * jax.random.normal(kw2, (KH, KW, C_MID, C_OUT), dtype=jnp.float32)
    b2 = 0.1 * jax.random.normal(kb2, (C_OUT,), dtype=jnp.float32)

    out = jax.block_until_ready(simple_denoise_cnn(x, w1, b1, w2, b2))
    ref = jax.block_until_ready(_reference(x, w1, b1, w2, b2))

    assert out.shape == (N, C_IN, H, W)
    # Tolerance allows for bf16-class MXU input rounding; structural errors (wrong tap/mask/weight
    # mapping) produce errors orders of magnitude larger.
    assert jnp.allclose(out, ref, atol=2e-2, rtol=2e-3), (
        "mismatch vs. conv reference: max abs err = "
        f"{float(jnp.max(jnp.abs(out - ref)))}")

    print("KERNEL_OK")
</pallas_src>

<mosaic_0001>
module attributes {stable_mosaic.version = 11 : i64} {
  func.func @_denoise_kernel(%arg0: i32, %arg1: memref<1x3x256xf32, #tpu.memory_space<vmem>>, %arg2: memref<9x16x3xf32, #tpu.memory_space<vmem>>, %arg3: memref<16x1xf32, #tpu.memory_space<vmem>>, %arg4: memref<9x3x16xf32, #tpu.memory_space<vmem>>, %arg5: memref<3x1xf32, #tpu.memory_space<vmem>>, %arg6: memref<2x256xf32, #tpu.memory_space<vmem>>, %arg7: memref<1x3x256xf32, #tpu.memory_space<vmem>>) attributes {dimension_semantics = [#tpu.dimension_semantics<parallel>], iteration_bounds = array<i64: 2>, scalar_prefetch = 0 : i64, scratch_operands = 0 : i64, tpu.core_type = #tpu.core_type<tc>, window_params = [{transform_indices = @transform_0, window_bounds = array<i64: 1, 3, 256>}, {pipeline_mode = #tpu.pipeline_mode<synchronous>, transform_indices = @transform_1, window_bounds = array<i64: 9, 16, 3>}, {pipeline_mode = #tpu.pipeline_mode<synchronous>, transform_indices = @transform_2, window_bounds = array<i64: 16, 1>}, {pipeline_mode = #tpu.pipeline_mode<synchronous>, transform_indices = @transform_3, window_bounds = array<i64: 9, 3, 16>}, {pipeline_mode = #tpu.pipeline_mode<synchronous>, transform_indices = @transform_4, window_bounds = array<i64: 3, 1>}, {pipeline_mode = #tpu.pipeline_mode<synchronous>, transform_indices = @transform_5, window_bounds = array<i64: 2, 256>}, {transform_indices = @transform_6, window_bounds = array<i64: 1, 3, 256>}]} {
    %c0 = arith.constant 0 : index
    %c0_0 = arith.constant 0 : index
    %0 = vector.load %arg6[%c0, %c0_0] : memref<2x256xf32, #tpu.memory_space<vmem>>, vector<1x256xf32>
    %c1 = arith.constant 1 : index
    %c0_1 = arith.constant 0 : index
    %1 = vector.load %arg6[%c1, %c0_1] : memref<2x256xf32, #tpu.memory_space<vmem>>, vector<1x256xf32>
    %c0_2 = arith.constant 0 : index
    %c0_3 = arith.constant 0 : index
    %c0_4 = arith.constant 0 : index
    %2 = vector.load %arg2[%c0_2, %c0_3, %c0_4] : memref<9x16x3xf32, #tpu.memory_space<vmem>>, vector<9x16x3xf32>
    %c0_5 = arith.constant 0 : index
    %c0_6 = arith.constant 0 : index
    %3 = vector.load %arg3[%c0_5, %c0_6] : memref<16x1xf32, #tpu.memory_space<vmem>>, vector<16x1xf32>
    %c0_7 = arith.constant 0 : index
    %c0_8 = arith.constant 0 : index
    %c0_9 = arith.constant 0 : index
    %4 = vector.load %arg4[%c0_7, %c0_8, %c0_9] : memref<9x3x16xf32, #tpu.memory_space<vmem>>, vector<9x3x16xf32>
    %c0_10 = arith.constant 0 : index
    %c0_11 = arith.constant 0 : index
    %5 = vector.load %arg5[%c0_10, %c0_11] : memref<3x1xf32, #tpu.memory_space<vmem>>, vector<3x1xf32>
    %c0_12 = arith.constant 0 : index
    %c0_13 = arith.constant 0 : index
    %c0_14 = arith.constant 0 : index
    %6 = vector.load %arg1[%c0_12, %c0_13, %c0_14] : memref<1x3x256xf32, #tpu.memory_space<vmem>>, vector<1x3x256xf32>
    %7 = vector.shape_cast %6 : vector<1x3x256xf32> to vector<3x256xf32>
    %8 = vector.shape_cast %3 : vector<16x1xf32> to vector<16x1xf32>
    %9 = vector.broadcast %8 : vector<16x1xf32> to vector<16x256xf32>
    %cst = arith.constant 0.000000e+00 : f32
    %10 = vector.broadcast %cst : f32 to vector<3x17xf32>
    %11 = vector.extract_strided_slice %7 {offsets = [0, 0], sizes = [3, 239], strides = [1, 1]} : vector<3x256xf32> to vector<3x239xf32>
    %12 = tpu.concatenate %10, %11 in 1 : vector<3x17xf32>, vector<3x239xf32> -> vector<3x256xf32>
    %13 = vector.broadcast %0 : vector<1x256xf32> to vector<3x256xf32>
    %14 = arith.mulf %12, %13 : vector<3x256xf32>
    %15 = vector.extract_strided_slice %2 {offsets = [0, 0, 0], sizes = [1, 16, 3], strides = [1, 1, 1]} : vector<9x16x3xf32> to vector<1x16x3xf32>
    %16 = vector.shape_cast %15 : vector<1x16x3xf32> to vector<16x3xf32>
    %cst_15 = arith.constant dense<0.000000e+00> : vector<16x256xf32>
    %17 = tpu.matmul %16, %14, %cst_15 {dimension_numbers = #tpu.dot_dimension_numbers<[1], [0], [0], [1], [0, 0, 1, 1], [], []>} : vector<16x3xf32>, vector<3x256xf32>, vector<16x256xf32> -> vector<16x256xf32>
    %18 = arith.addf %9, %17 : vector<16x256xf32>
    %cst_16 = arith.constant 0.000000e+00 : f32
    %19 = vector.broadcast %cst_16 : f32 to vector<3x16xf32>
    %20 = vector.extract_strided_slice %7 {offsets = [0, 0], sizes = [3, 240], strides = [1, 1]} : vector<3x256xf32> to vector<3x240xf32>
    %21 = tpu.concatenate %19, %20 in 1 : vector<3x16xf32>, vector<3x240xf32> -> vector<3x256xf32>
    %22 = vector.extract_strided_slice %2 {offsets = [1, 0, 0], sizes = [1, 16, 3], strides = [1, 1, 1]} : vector<9x16x3xf32> to vector<1x16x3xf32>
    %23 = vector.shape_cast %22 : vector<1x16x3xf32> to vector<16x3xf32>
    %cst_17 = arith.constant dense<0.000000e+00> : vector<16x256xf32>
    %24 = tpu.matmul %23, %21, %cst_17 {dimension_numbers = #tpu.dot_dimension_numbers<[1], [0], [0], [1], [0, 0, 1, 1], [], []>} : vector<16x3xf32>, vector<3x256xf32>, vector<16x256xf32> -> vector<16x256xf32>
    %25 = arith.addf %18, %24 : vector<16x256xf32>
    %cst_18 = arith.constant 0.000000e+00 : f32
    %26 = vector.broadcast %cst_18 : f32 to vector<3x15xf32>
    %27 = vector.extract_strided_slice %7 {offsets = [0, 0], sizes = [3, 241], strides = [1, 1]} : vector<3x256xf32> to vector<3x241xf32>
    %28 = tpu.concatenate %26, %27 in 1 : vector<3x15xf32>, vector<3x241xf32> -> vector<3x256xf32>
    %29 = vector.broadcast %1 : vector<1x256xf32> to vector<3x256xf32>
    %30 = arith.mulf %28, %29 : vector<3x256xf32>
    %31 = vector.extract_strided_slice %2 {offsets = [2, 0, 0], sizes = [1, 16, 3], strides = [1, 1, 1]} : vector<9x16x3xf32> to vector<1x16x3xf32>
    %32 = vector.shape_cast %31 : vector<1x16x3xf32> to vector<16x3xf32>
    %cst_19 = arith.constant dense<0.000000e+00> : vector<16x256xf32>
    %33 = tpu.matmul %32, %30, %cst_19 {dimension_numbers = #tpu.dot_dimension_numbers<[1], [0], [0], [1], [0, 0, 1, 1], [], []>} : vector<16x3xf32>, vector<3x256xf32>, vector<16x256xf32> -> vector<16x256xf32>
    %34 = arith.addf %25, %33 : vector<16x256xf32>
    %cst_20 = arith.constant 0.000000e+00 : f32
    %35 = vector.broadcast %cst_20 : f32 to vector<3x1xf32>
    %36 = vector.extract_strided_slice %7 {offsets = [0, 0], sizes = [3, 255], strides = [1, 1]} : vector<3x256xf32> to vector<3x255xf32>
    %37 = tpu.concatenate %35, %36 in 1 : vector<3x1xf32>, vector<3x255xf32> -> vector<3x256xf32>
    %38 = vector.broadcast %0 : vector<1x256xf32> to vector<3x256xf32>
    %39 = arith.mulf %37, %38 : vector<3x256xf32>
    %40 = vector.extract_strided_slice %2 {offsets = [3, 0, 0], sizes = [1, 16, 3], strides = [1, 1, 1]} : vector<9x16x3xf32> to vector<1x16x3xf32>
    %41 = vector.shape_cast %40 : vector<1x16x3xf32> to vector<16x3xf32>
    %cst_21 = arith.constant dense<0.000000e+00> : vector<16x256xf32>
    %42 = tpu.matmul %41, %39, %cst_21 {dimension_numbers = #tpu.dot_dimension_numbers<[1], [0], [0], [1], [0, 0, 1, 1], [], []>} : vector<16x3xf32>, vector<3x256xf32>, vector<16x256xf32> -> vector<16x256xf32>
    %43 = arith.addf %34, %42 : vector<16x256xf32>
    %44 = vector.extract_strided_slice %2 {offsets = [4, 0, 0], sizes = [1, 16, 3], strides = [1, 1, 1]} : vector<9x16x3xf32> to vector<1x16x3xf32>
    %45 = vector.shape_cast %44 : vector<1x16x3xf32> to vector<16x3xf32>
    %cst_22 = arith.constant dense<0.000000e+00> : vector<16x256xf32>
    %46 = tpu.matmul %45, %7, %cst_22 {dimension_numbers = #tpu.dot_dimension_numbers<[1], [0], [0], [1], [0, 0, 1, 1], [], []>} : vector<16x3xf32>, vector<3x256xf32>, vector<16x256xf32> -> vector<16x256xf32>
    %47 = arith.addf %43, %46 : vector<16x256xf32>
    %48 = vector.extract_strided_slice %7 {offsets = [0, 1], sizes = [3, 255], strides = [1, 1]} : vector<3x256xf32> to vector<3x255xf32>
    %cst_23 = arith.constant 0.000000e+00 : f32
    %49 = vector.broadcast %cst_23 : f32 to vector<3x1xf32>
    %50 = tpu.concatenate %48, %49 in 1 : vector<3x255xf32>, vector<3x1xf32> -> vector<3x256xf32>
    %51 = vector.broadcast %1 : vector<1x256xf32> to vector<3x256xf32>
    %52 = arith.mulf %50, %51 : vector<3x256xf32>
    %53 = vector.extract_strided_slice %2 {offsets = [5, 0, 0], sizes = [1, 16, 3], strides = [1, 1, 1]} : vector<9x16x3xf32> to vector<1x16x3xf32>
    %54 = vector.shape_cast %53 : vector<1x16x3xf32> to vector<16x3xf32>
    %cst_24 = arith.constant dense<0.000000e+00> : vector<16x256xf32>
    %55 = tpu.matmul %54, %52, %cst_24 {dimension_numbers = #tpu.dot_dimension_numbers<[1], [0], [0], [1], [0, 0, 1, 1], [], []>} : vector<16x3xf32>, vector<3x256xf32>, vector<16x256xf32> -> vector<16x256xf32>
    %56 = arith.addf %47, %55 : vector<16x256xf32>
    %57 = vector.extract_strided_slice %7 {offsets = [0, 15], sizes = [3, 241], strides = [1, 1]} : vector<3x256xf32> to vector<3x241xf32>
    %cst_25 = arith.constant 0.000000e+00 : f32
    %58 = vector.broadcast %cst_25 : f32 to vector<3x15xf32>
    %59 = tpu.concatenate %57, %58 in 1 : vector<3x241xf32>, vector<3x15xf32> -> vector<3x256xf32>
    %60 = vector.broadcast %0 : vector<1x256xf32> to vector<3x256xf32>
    %61 = arith.mulf %59, %60 : vector<3x256xf32>
    %62 = vector.extract_strided_slice %2 {offsets = [6, 0, 0], sizes = [1, 16, 3], strides = [1, 1, 1]} : vector<9x16x3xf32> to vector<1x16x3xf32>
    %63 = vector.shape_cast %62 : vector<1x16x3xf32> to vector<16x3xf32>
    %cst_26 = arith.constant dense<0.000000e+00> : vector<16x256xf32>
    %64 = tpu.matmul %63, %61, %cst_26 {dimension_numbers = #tpu.dot_dimension_numbers<[1], [0], [0], [1], [0, 0, 1, 1], [], []>} : vector<16x3xf32>, vector<3x256xf32>, vector<16x256xf32> -> vector<16x256xf32>
    %65 = arith.addf %56, %64 : vector<16x256xf32>
    %66 = vector.extract_strided_slice %7 {offsets = [0, 16], sizes = [3, 240], strides = [1, 1]} : vector<3x256xf32> to vector<3x240xf32>
    %cst_27 = arith.constant 0.000000e+00 : f32
    %67 = vector.broadcast %cst_27 : f32 to vector<3x16xf32>
    %68 = tpu.concatenate %66, %67 in 1 : vector<3x240xf32>, vector<3x16xf32> -> vector<3x256xf32>
    %69 = vector.extract_strided_slice %2 {offsets = [7, 0, 0], sizes = [1, 16, 3], strides = [1, 1, 1]} : vector<9x16x3xf32> to vector<1x16x3xf32>
    %70 = vector.shape_cast %69 : vector<1x16x3xf32> to vector<16x3xf32>
    %cst_28 = arith.constant dense<0.000000e+00> : vector<16x256xf32>
    %71 = tpu.matmul %70, %68, %cst_28 {dimension_numbers = #tpu.dot_dimension_numbers<[1], [0], [0], [1], [0, 0, 1, 1], [], []>} : vector<16x3xf32>, vector<3x256xf32>, vector<16x256xf32> -> vector<16x256xf32>
    %72 = arith.addf %65, %71 : vector<16x256xf32>
    %73 = vector.extract_strided_slice %7 {offsets = [0, 17], sizes = [3, 239], strides = [1, 1]} : vector<3x256xf32> to vector<3x239xf32>
    %cst_29 = arith.constant 0.000000e+00 : f32
    %74 = vector.broadcast %cst_29 : f32 to vector<3x17xf32>
    %75 = tpu.concatenate %73, %74 in 1 : vector<3x239xf32>, vector<3x17xf32> -> vector<3x256xf32>
    %76 = vector.broadcast %1 : vector<1x256xf32> to vector<3x256xf32>
    %77 = arith.mulf %75, %76 : vector<3x256xf32>
    %78 = vector.extract_strided_slice %2 {offsets = [8, 0, 0], sizes = [1, 16, 3], strides = [1, 1, 1]} : vector<9x16x3xf32> to vector<1x16x3xf32>
    %79 = vector.shape_cast %78 : vector<1x16x3xf32> to vector<16x3xf32>
    %cst_30 = arith.constant dense<0.000000e+00> : vector<16x256xf32>
    %80 = tpu.matmul %79, %77, %cst_30 {dimension_numbers = #tpu.dot_dimension_numbers<[1], [0], [0], [1], [0, 0, 1, 1], [], []>} : vector<16x3xf32>, vector<3x256xf32>, vector<16x256xf32> -> vector<16x256xf32>
    %81 = arith.addf %72, %80 : vector<16x256xf32>
    %cst_31 = arith.constant 0.000000e+00 : f32
    %82 = vector.broadcast %cst_31 : f32 to vector<16x256xf32>
    %83 = arith.maximumf %81, %82 : vector<16x256xf32>
    %84 = vector.shape_cast %5 : vector<3x1xf32> to vector<3x1xf32>
    %85 = vector.broadcast %84 : vector<3x1xf32> to vector<3x256xf32>
    %cst_32 = arith.constant 0.000000e+00 : f32
    %86 = vector.broadcast %cst_32 : f32 to vector<16x17xf32>
    %87 = vector.extract_strided_slice %83 {offsets = [0, 0], sizes = [16, 239], strides = [1, 1]} : vector<16x256xf32> to vector<16x239xf32>
    %88 = tpu.concatenate %86, %87 in 1 : vector<16x17xf32>, vector<16x239xf32> -> vector<16x256xf32>
    %89 = vector.broadcast %0 : vector<1x256xf32> to vector<16x256xf32>
    %90 = arith.mulf %88, %89 : vector<16x256xf32>
    %91 = vector.extract_strided_slice %4 {offsets = [0, 0, 0], sizes = [1, 3, 16], strides = [1, 1, 1]} : vector<9x3x16xf32> to vector<1x3x16xf32>
    %92 = vector.shape_cast %91 : vector<1x3x16xf32> to vector<3x16xf32>
    %cst_33 = arith.constant dense<0.000000e+00> : vector<3x256xf32>
    %93 = tpu.matmul %92, %90, %cst_33 {dimension_numbers = #tpu.dot_dimension_numbers<[1], [0], [0], [1], [0, 0, 1, 1], [], []>} : vector<3x16xf32>, vector<16x256xf32>, vector<3x256xf32> -> vector<3x256xf32>
    %94 = arith.addf %85, %93 : vector<3x256xf32>
    %cst_34 = arith.constant 0.000000e+00 : f32
    %95 = vector.broadcast %cst_34 : f32 to vector<16x16xf32>
    %96 = vector.extract_strided_slice %83 {offsets = [0, 0], sizes = [16, 240], strides = [1, 1]} : vector<16x256xf32> to vector<16x240xf32>
    %97 = tpu.concatenate %95, %96 in 1 : vector<16x16xf32>, vector<16x240xf32> -> vector<16x256xf32>
    %98 = vector.extract_strided_slice %4 {offsets = [1, 0, 0], sizes = [1, 3, 16], strides = [1, 1, 1]} : vector<9x3x16xf32> to vector<1x3x16xf32>
    %99 = vector.shape_cast %98 : vector<1x3x16xf32> to vector<3x16xf32>
    %cst_35 = arith.constant dense<0.000000e+00> : vector<3x256xf32>
    %100 = tpu.matmul %99, %97, %cst_35 {dimension_numbers = #tpu.dot_dimension_numbers<[1], [0], [0], [1], [0, 0, 1, 1], [], []>} : vector<3x16xf32>, vector<16x256xf32>, vector<3x256xf32> -> vector<3x256xf32>
    %101 = arith.addf %94, %100 : vector<3x256xf32>
    %cst_36 = arith.constant 0.000000e+00 : f32
    %102 = vector.broadcast %cst_36 : f32 to vector<16x15xf32>
    %103 = vector.extract_strided_slice %83 {offsets = [0, 0], sizes = [16, 241], strides = [1, 1]} : vector<16x256xf32> to vector<16x241xf32>
    %104 = tpu.concatenate %102, %103 in 1 : vector<16x15xf32>, vector<16x241xf32> -> vector<16x256xf32>
    %105 = vector.broadcast %1 : vector<1x256xf32> to vector<16x256xf32>
    %106 = arith.mulf %104, %105 : vector<16x256xf32>
    %107 = vector.extract_strided_slice %4 {offsets = [2, 0, 0], sizes = [1, 3, 16], strides = [1, 1, 1]} : vector<9x3x16xf32> to vector<1x3x16xf32>
    %108 = vector.shape_cast %107 : vector<1x3x16xf32> to vector<3x16xf32>
    %cst_37 = arith.constant dense<0.000000e+00> : vector<3x256xf32>
    %109 = tpu.matmul %108, %106, %cst_37 {dimension_numbers = #tpu.dot_dimension_numbers<[1], [0], [0], [1], [0, 0, 1, 1], [], []>} : vector<3x16xf32>, vector<16x256xf32>, vector<3x256xf32> -> vector<3x256xf32>
    %110 = arith.addf %101, %109 : vector<3x256xf32>
    %cst_38 = arith.constant 0.000000e+00 : f32
    %111 = vector.broadcast %cst_38 : f32 to vector<16x1xf32>
    %112 = vector.extract_strided_slice %83 {offsets = [0, 0], sizes = [16, 255], strides = [1, 1]} : vector<16x256xf32> to vector<16x255xf32>
    %113 = tpu.concatenate %111, %112 in 1 : vector<16x1xf32>, vector<16x255xf32> -> vector<16x256xf32>
    %114 = vector.broadcast %0 : vector<1x256xf32> to vector<16x256xf32>
    %115 = arith.mulf %113, %114 : vector<16x256xf32>
    %116 = vector.extract_strided_slice %4 {offsets = [3, 0, 0], sizes = [1, 3, 16], strides = [1, 1, 1]} : vector<9x3x16xf32> to vector<1x3x16xf32>
    %117 = vector.shape_cast %116 : vector<1x3x16xf32> to vector<3x16xf32>
    %cst_39 = arith.constant dense<0.000000e+00> : vector<3x256xf32>
    %118 = tpu.matmul %117, %115, %cst_39 {dimension_numbers = #tpu.dot_dimension_numbers<[1], [0], [0], [1], [0, 0, 1, 1], [], []>} : vector<3x16xf32>, vector<16x256xf32>, vector<3x256xf32> -> vector<3x256xf32>
    %119 = arith.addf %110, %118 : vector<3x256xf32>
    %120 = vector.extract_strided_slice %4 {offsets = [4, 0, 0], sizes = [1, 3, 16], strides = [1, 1, 1]} : vector<9x3x16xf32> to vector<1x3x16xf32>
    %121 = vector.shape_cast %120 : vector<1x3x16xf32> to vector<3x16xf32>
    %cst_40 = arith.constant dense<0.000000e+00> : vector<3x256xf32>
    %122 = tpu.matmul %121, %83, %cst_40 {dimension_numbers = #tpu.dot_dimension_numbers<[1], [0], [0], [1], [0, 0, 1, 1], [], []>} : vector<3x16xf32>, vector<16x256xf32>, vector<3x256xf32> -> vector<3x256xf32>
    %123 = arith.addf %119, %122 : vector<3x256xf32>
    %124 = vector.extract_strided_slice %83 {offsets = [0, 1], sizes = [16, 255], strides = [1, 1]} : vector<16x256xf32> to vector<16x255xf32>
    %cst_41 = arith.constant 0.000000e+00 : f32
    %125 = vector.broadcast %cst_41 : f32 to vector<16x1xf32>
    %126 = tpu.concatenate %124, %125 in 1 : vector<16x255xf32>, vector<16x1xf32> -> vector<16x256xf32>
    %127 = vector.broadcast %1 : vector<1x256xf32> to vector<16x256xf32>
    %128 = arith.mulf %126, %127 : vector<16x256xf32>
    %129 = vector.extract_strided_slice %4 {offsets = [5, 0, 0], sizes = [1, 3, 16], strides = [1, 1, 1]} : vector<9x3x16xf32> to vector<1x3x16xf32>
    %130 = vector.shape_cast %129 : vector<1x3x16xf32> to vector<3x16xf32>
    %cst_42 = arith.constant dense<0.000000e+00> : vector<3x256xf32>
    %131 = tpu.matmul %130, %128, %cst_42 {dimension_numbers = #tpu.dot_dimension_numbers<[1], [0], [0], [1], [0, 0, 1, 1], [], []>} : vector<3x16xf32>, vector<16x256xf32>, vector<3x256xf32> -> vector<3x256xf32>
    %132 = arith.addf %123, %131 : vector<3x256xf32>
    %133 = vector.extract_strided_slice %83 {offsets = [0, 15], sizes = [16, 241], strides = [1, 1]} : vector<16x256xf32> to vector<16x241xf32>
    %cst_43 = arith.constant 0.000000e+00 : f32
    %134 = vector.broadcast %cst_43 : f32 to vector<16x15xf32>
    %135 = tpu.concatenate %133, %134 in 1 : vector<16x241xf32>, vector<16x15xf32> -> vector<16x256xf32>
    %136 = vector.broadcast %0 : vector<1x256xf32> to vector<16x256xf32>
    %137 = arith.mulf %135, %136 : vector<16x256xf32>
    %138 = vector.extract_strided_slice %4 {offsets = [6, 0, 0], sizes = [1, 3, 16], strides = [1, 1, 1]} : vector<9x3x16xf32> to vector<1x3x16xf32>
    %139 = vector.shape_cast %138 : vector<1x3x16xf32> to vector<3x16xf32>
    %cst_44 = arith.constant dense<0.000000e+00> : vector<3x256xf32>
    %140 = tpu.matmul %139, %137, %cst_44 {dimension_numbers = #tpu.dot_dimension_numbers<[1], [0], [0], [1], [0, 0, 1, 1], [], []>} : vector<3x16xf32>, vector<16x256xf32>, vector<3x256xf32> -> vector<3x256xf32>
    %141 = arith.addf %132, %140 : vector<3x256xf32>
    %142 = vector.extract_strided_slice %83 {offsets = [0, 16], sizes = [16, 240], strides = [1, 1]} : vector<16x256xf32> to vector<16x240xf32>
    %cst_45 = arith.constant 0.000000e+00 : f32
    %143 = vector.broadcast %cst_45 : f32 to vector<16x16xf32>
    %144 = tpu.concatenate %142, %143 in 1 : vector<16x240xf32>, vector<16x16xf32> -> vector<16x256xf32>
    %145 = vector.extract_strided_slice %4 {offsets = [7, 0, 0], sizes = [1, 3, 16], strides = [1, 1, 1]} : vector<9x3x16xf32> to vector<1x3x16xf32>
    %146 = vector.shape_cast %145 : vector<1x3x16xf32> to vector<3x16xf32>
    %cst_46 = arith.constant dense<0.000000e+00> : vector<3x256xf32>
    %147 = tpu.matmul %146, %144, %cst_46 {dimension_numbers = #tpu.dot_dimension_numbers<[1], [0], [0], [1], [0, 0, 1, 1], [], []>} : vector<3x16xf32>, vector<16x256xf32>, vector<3x256xf32> -> vector<3x256xf32>
    %148 = arith.addf %141, %147 : vector<3x256xf32>
    %149 = vector.extract_strided_slice %83 {offsets = [0, 17], sizes = [16, 239], strides = [1, 1]} : vector<16x256xf32> to vector<16x239xf32>
    %cst_47 = arith.constant 0.000000e+00 : f32
    %150 = vector.broadcast %cst_47 : f32 to vector<16x17xf32>
    %151 = tpu.concatenate %149, %150 in 1 : vector<16x239xf32>, vector<16x17xf32> -> vector<16x256xf32>
    %152 = vector.broadcast %1 : vector<1x256xf32> to vector<16x256xf32>
    %153 = arith.mulf %151, %152 : vector<16x256xf32>
    %154 = vector.extract_strided_slice %4 {offsets = [8, 0, 0], sizes = [1, 3, 16], strides = [1, 1, 1]} : vector<9x3x16xf32> to vector<1x3x16xf32>
    %155 = vector.shape_cast %154 : vector<1x3x16xf32> to vector<3x16xf32>
    %cst_48 = arith.constant dense<0.000000e+00> : vector<3x256xf32>
    %156 = tpu.matmul %155, %153, %cst_48 {dimension_numbers = #tpu.dot_dimension_numbers<[1], [0], [0], [1], [0, 0, 1, 1], [], []>} : vector<3x16xf32>, vector<16x256xf32>, vector<3x256xf32> -> vector<3x256xf32>
    %157 = arith.addf %148, %156 : vector<3x256xf32>
    %c0_49 = arith.constant 0 : index
    %c0_50 = arith.constant 0 : index
    %c0_51 = arith.constant 0 : index
    %158 = vector.load %arg7[%c0_49, %c0_50, %c0_51] : memref<1x3x256xf32, #tpu.memory_space<vmem>>, vector<1x3x256xf32>
    %159 = vector.shape_cast %158 : vector<1x3x256xf32> to vector<3x256xf32>
    %160 = vector.shape_cast %157 : vector<3x256xf32> to vector<1x3x256xf32>
    tpu.vector_store %arg7[%c0_49, %c0_50, %c0_51], %160 {strides = array<i32>} : memref<1x3x256xf32, #tpu.memory_space<vmem>>, vector<1x3x256xf32>,
    return
  }
  func.func @transform_0(%arg0: i32) -> (i32, i32, i32) {
    %c0_i32 = arith.constant 0 : i32
    %c0_i32_0 = arith.constant 0 : i32
    %c0_i32_1 = arith.constant 0 : i32
    return %arg0, %c0_i32, %c0_i32_0 : i32, i32, i32
  }
  func.func @transform_1(%arg0: i32) -> (i32, i32, i32) {
    %c0_i32 = arith.constant 0 : i32
    %c0_i32_0 = arith.constant 0 : i32
    %c0_i32_1 = arith.constant 0 : i32
    %c0_i32_2 = arith.constant 0 : i32
    return %c0_i32, %c0_i32_0, %c0_i32_1 : i32, i32, i32
  }
  func.func @transform_2(%arg0: i32) -> (i32, i32) {
    %c0_i32 = arith.constant 0 : i32
    %c0_i32_0 = arith.constant 0 : i32
    %c0_i32_1 = arith.constant 0 : i32
    return %c0_i32, %c0_i32_0 : i32, i32
  }
  func.func @transform_3(%arg0: i32) -> (i32, i32, i32) {
    %c0_i32 = arith.constant 0 : i32
    %c0_i32_0 = arith.constant 0 : i32
    %c0_i32_1 = arith.constant 0 : i32
    %c0_i32_2 = arith.constant 0 : i32
    return %c0_i32, %c0_i32_0, %c0_i32_1 : i32, i32, i32
  }
  func.func @transform_4(%arg0: i32) -> (i32, i32) {
    %c0_i32 = arith.constant 0 : i32
    %c0_i32_0 = arith.constant 0 : i32
    %c0_i32_1 = arith.constant 0 : i32
    return %c0_i32, %c0_i32_0 : i32, i32
  }
  func.func @transform_5(%arg0: i32) -> (i32, i32) {
    %c0_i32 = arith.constant 0 : i32
    %c0_i32_0 = arith.constant 0 : i32
    %c0_i32_1 = arith.constant 0 : i32
    return %c0_i32, %c0_i32_0 : i32, i32
  }
  func.func @transform_6(%arg0: i32) -> (i32, i32, i32) {
    %c0_i32 = arith.constant 0 : i32
    %c0_i32_0 = arith.constant 0 : i32
    %c0_i32_1 = arith.constant 0 : i32
    return %arg0, %c0_i32, %c0_i32_0 : i32, i32, i32
  }
}

</mosaic_0001>

<llo_original>
// kernel: tpu_custom_call.1
$region0: #{tpu_custom_call.1}
  #allocation0 [shape = 'u32[]', space=smem, size = 0x4, offset = 0x4, fixed_abs, tag = 'smem constant byte address 0x4 - core index']
  #allocation1 [shape = 'u32[144,128]{1,0:T(1,128)}', space=vmem, size = 0x12000, scoped, tag = 'internal scratch']
  %s0 = inlined_call_operand.vmem [shape: f32[2,3,256], index: 0, kind: input, shape index: {}]
  %s1 = inlined_call_operand.vmem [shape: f32[9,16,3], index: 1, kind: input, shape index: {}]
  %s2 = inlined_call_operand.vmem [shape: f32[16,1], index: 2, kind: input, shape index: {}]
  %s3 = inlined_call_operand.vmem [shape: f32[9,3,16], index: 3, kind: input, shape index: {}]
  %s4 = inlined_call_operand.vmem [shape: f32[3,1], index: 4, kind: input, shape index: {}]
  %s5 = inlined_call_operand.vmem [shape: f32[2,256], index: 5, kind: input, shape index: {}]
  %s6 = inlined_call_operand.vmem [shape: f32[2,3,256], index: 6, kind: output, shape index: {}]
  %s7 = sld [smem:[#allocation0]]
  $region57: #{tpu_custom_call.1} parent=0
    _
  %s9 = ssub.s32 1, %s7
  %s10 = scalar_select 0, %s9, %s7
  loop: start=0, step=1, limit=4
  $region2: #{tpu_custom_call.1} parent=0 // loop_pre_header
    _
  $region3: #{tpu_custom_call.1} parent=0 // loop_header
    %s12 = sphi 0, %s16
    %p13 = scmp.ge.s32.totalorder %s12, 4
    %s22 = sphi 0, %s24
    %s25 = sphi 0, %s22
    %s26 = sphi 0, %s25
    %s42 = sphi 0, %s26
    %s46 = sphi 0, %s46
    %s48 = sphi 0, %s46
    %s49 = sphi 0, %s48
    %s63 = sphi 0, %s49
    %s67 = sphi 0, %s67
    %s69 = sphi 0, %s67
    %s70 = sphi 0, %s69
    %s84 = sphi 0, %s70
    %s88 = sphi 0, %s88
    %s90 = sphi 0, %s88
    %s91 = sphi 0, %s90
    %s105 = sphi 0, %s91
    %s109 = sphi 0, %s109
    %s111 = sphi 0, %s109
    %s112 = sphi 0, %s111
    %s126 = sphi 0, %s112
    %s130 = sphi 0, %s130
    %s132 = sphi 0, %s130
    %s133 = sphi 0, %s132
    %s147 = sphi 0, %s133
    %s153 = sphi 0, %s155
    %s156 = sphi 0, %s153
    %s157 = sphi 0, %s156
    %s173 = sphi 0, %s157
  $region4: #{tpu_custom_call.1} parent=0 // loop_header_branch
    %15 = sbr.rel (%p13) target = $region8
  $region5: #{tpu_custom_call.1} parent=0 // loop_body
    %s17 = ssub.s32 %s12, 1
    %s18 = ssub.s32 %s12, 2
    %s19 = sadd.s32 %s12, 1
    %s20 = ssub.s32 %s12, %s19
    %p21 = scmp.eq.s32.totalorder %s20, 0
    %s23 = sadd.s32 %s22, 1
    %s24 = scalar_select %p21, %s22, %s23
    %p27 = pneg %p21
    %p28 = scmp.eq.s32.totalorder %s12, 1
    %p29 = por %p27, %p28
    %p30 = scmp.ne.s32.totalorder %s22, %s25
    %p31 = scmp.eq.s32.totalorder %s12, 0
    %p32 = por %p30, %p31
    %p33 = scmp.ne.s32.totalorder %s22, %s25
    %p34 = scmp.eq.s32.totalorder %s17, 1
    %p35 = por %p33, %p34
    %p36 = scmp.ne.s32.totalorder %s25, %s26
    %p37 = scmp.eq.s32.totalorder %s17, 0
    %p38 = por %p36, %p37
    %p39 = scmp.ne.s32.totalorder %s25, %s26
    %p40 = scmp.eq.s32.totalorder %s18, 1
    %p41 = por %p39, %p40
    %p43 = scmp.ne.s32.totalorder %s26, %s42
    %p44 = scmp.eq.s32.totalorder %s18, 0
    %p45 = por %p43, %p44
    %s47 = sadd.s32 %s46, 1
    %p50 = scmp.eq.s32.totalorder %s12, 1
    %p51 = scmp.ne.s32.totalorder %s46, %s48
    %p52 = scmp.eq.s32.totalorder %s12, 0
    %p53 = por %p51, %p52
    %p54 = scmp.ne.s32.totalorder %s46, %s48
    %p55 = scmp.eq.s32.totalorder %s17, 1
    %p56 = por %p54, %p55
    %p57 = scmp.ne.s32.totalorder %s48, %s49
    %p58 = scmp.eq.s32.totalorder %s17, 0
    %p59 = por %p57, %p58
    %p60 = scmp.ne.s32.totalorder %s48, %s49
    %p61 = scmp.eq.s32.totalorder %s18, 1
    %p62 = por %p60, %p61
    %p64 = scmp.ne.s32.totalorder %s49, %s63
    %p65 = scmp.eq.s32.totalorder %s18, 0
    %p66 = por %p64, %p65
    %s68 = sadd.s32 %s67, 1
    %p71 = scmp.eq.s32.totalorder %s12, 1
    %p72 = scmp.ne.s32.totalorder %s67, %s69
    %p73 = scmp.eq.s32.totalorder %s12, 0
    %p74 = por %p72, %p73
    %p75 = scmp.ne.s32.totalorder %s67, %s69
    %p76 = scmp.eq.s32.totalorder %s17, 1
    %p77 = por %p75, %p76
    %p78 = scmp.ne.s32.totalorder %s69, %s70
    %p79 = scmp.eq.s32.totalorder %s17, 0
    %p80 = por %p78, %p79
    %p81 = scmp.ne.s32.totalorder %s69, %s70
    %p82 = scmp.eq.s32.totalorder %s18, 1
    %p83 = por %p81, %p82
    %p85 = scmp.ne.s32.totalorder %s70, %s84
    %p86 = scmp.eq.s32.totalorder %s18, 0
    %p87 = por %p85, %p86
    %s89 = sadd.s32 %s88, 1
    %p92 = scmp.eq.s32.totalorder %s12, 1
    %p93 = scmp.ne.s32.totalorder %s88, %s90
    %p94 = scmp.eq.s32.totalorder %s12, 0
    %p95 = por %p93, %p94
    %p96 = scmp.ne.s32.totalorder %s88, %s90
    %p97 = scmp.eq.s32.totalorder %s17, 1
    %p98 = por %p96, %p97
    %p99 = scmp.ne.s32.totalorder %s90, %s91
    %p100 = scmp.eq.s32.totalorder %s17, 0
    %p101 = por %p99, %p100
    %p102 = scmp.ne.s32.totalorder %s90, %s91
    %p103 = scmp.eq.s32.totalorder %s18, 1
    %p104 = por %p102, %p103
    %p106 = scmp.ne.s32.totalorder %s91, %s105
    %p107 = scmp.eq.s32.totalorder %s18, 0
    %p108 = por %p106, %p107
    %s110 = sadd.s32 %s109, 1
    %p113 = scmp.eq.s32.totalorder %s12, 1
    %p114 = scmp.ne.s32.totalorder %s109, %s111
    %p115 = scmp.eq.s32.totalorder %s12, 0
    %p116 = por %p114, %p115
    %p117 = scmp.ne.s32.totalorder %s109, %s111
    %p118 = scmp.eq.s32.totalorder %s17, 1
    %p119 = por %p117, %p118
    %p120 = scmp.ne.s32.totalorder %s111, %s112
    %p121 = scmp.eq.s32.totalorder %s17, 0
    %p122 = por %p120, %p121
    %p123 = scmp.ne.s32.totalorder %s111, %s112
    %p124 = scmp.eq.s32.totalorder %s18, 1
    %p125 = por %p123, %p124
    %p127 = scmp.ne.s32.totalorder %s112, %s126
    %p128 = scmp.eq.s32.totalorder %s18, 0
    %p129 = por %p127, %p128
    %s131 = sadd.s32 %s130, 1
    %p134 = scmp.eq.s32.totalorder %s12, 1
    %p135 = scmp.ne.s32.totalorder %s130, %s132
    %p136 = scmp.eq.s32.totalorder %s12, 0
    %p137 = por %p135, %p136
    %p138 = scmp.ne.s32.totalorder %s130, %s132
    %p139 = scmp.eq.s32.totalorder %s17, 1
    %p140 = por %p138, %p139
    %p141 = scmp.ne.s32.totalorder %s132, %s133
    %p142 = scmp.eq.s32.totalorder %s17, 0
    %p143 = por %p141, %p142
    %p144 = scmp.ne.s32.totalorder %s132, %s133
    %p145 = scmp.eq.s32.totalorder %s18, 1
    %p146 = por %p144, %p145
    %p148 = scmp.ne.s32.totalorder %s133, %s147
    %p149 = scmp.eq.s32.totalorder %s18, 0
    %p150 = por %p148, %p149
    %s151 = ssub.s32 %s12, %s19
    %p152 = scmp.eq.s32.totalorder %s151, 0
    %s154 = sadd.s32 %s153, 1
    %s155 = scalar_select %p152, %s153, %s154
    %p158 = pneg %p152
    %p159 = scmp.eq.s32.totalorder %s12, 1
    %p160 = por %p158, %p159
    %p161 = scmp.ne.s32.totalorder %s153, %s156
    %p162 = scmp.eq.s32.totalorder %s12, 0
    %p163 = por %p161, %p162
    %p164 = scmp.ne.s32.totalorder %s153, %s156
    %p165 = scmp.eq.s32.totalorder %s17, 1
    %p166 = por %p164, %p165
    %p167 = scmp.ne.s32.totalorder %s156, %s157
    %p168 = scmp.eq.s32.totalorder %s17, 0
    %p169 = por %p167, %p168
    %p170 = scmp.ne.s32.totalorder %s156, %s157
    %p171 = scmp.eq.s32.totalorder %s18, 1
    %p172 = por %p170, %p171
    %p174 = scmp.ne.s32.totalorder %s157, %s173
    %p175 = scmp.eq.s32.totalorder %s18, 0
    %p176 = por %p174, %p175
    %p177 = scmp.le.s32.totalorder 1, %s12
    %p178 = scmp.lt.s32.totalorder %s12, 3
    %p179 = pnand %p177, %p178
    %p180 = pneg %p179
    // Predicated region
    $region9: #{tpu_custom_call.1} parent=5 // pred_check
      _
    $region10: #{tpu_custom_call.1} parent=5 // pred_check_branch
      %182 = sbr.rel (%p179) target = $region12
    $region11: #{tpu_custom_call.1} parent=5 // pred_region
      %s183 = ssub.s32 %s12, 1
      // Predicated region
      $region13: #{tpu_custom_call.1} parent=11 // pred_check
        %p184 = pneg %p59
      $region14: #{tpu_custom_call.1} parent=11 // pred_check_branch
        %186 = sbr.rel (%p184) target = $region16
      $region15: #{tpu_custom_call.1} parent=11 // pred_region
        _
      $region16: #{tpu_custom_call.1} parent=11 // pred_fallthru
        _
      // Predicated region
      $region17: #{tpu_custom_call.1} parent=11 // pred_check
        %p187 = pneg %p80
      $region18: #{tpu_custom_call.1} parent=11 // pred_check_branch
        %189 = sbr.rel (%p187) target = $region20
      $region19: #{tpu_custom_call.1} parent=11 // pred_region
        _
      $region20: #{tpu_custom_call.1} parent=11 // pred_fallthru
        _
      // Predicated region
      $region21: #{tpu_custom_call.1} parent=11 // pred_check
        %p190 = pneg %p101
      $region22: #{tpu_custom_call.1} parent=11 // pred_check_branch
        %192 = sbr.rel (%p190) target = $region24
      $region23: #{tpu_custom_call.1} parent=11 // pred_region
        _
      $region24: #{tpu_custom_call.1} parent=11 // pred_fallthru
        _
      // Predicated region
      $region25: #{tpu_custom_call.1} parent=11 // pred_check
        %p193 = pneg %p122
      $region26: #{tpu_custom_call.1} parent=11 // pred_check_branch
        %195 = sbr.rel (%p193) target = $region28
      $region27: #{tpu_custom_call.1} parent=11 // pred_region
        _
      $region28: #{tpu_custom_call.1} parent=11 // pred_fallthru
        _
      // Predicated region
      $region29: #{tpu_custom_call.1} parent=11 // pred_check
        %p196 = pneg %p143
      $region30: #{tpu_custom_call.1} parent=11 // pred_check_branch
        %198 = sbr.rel (%p196) target = $region32
      $region31: #{tpu_custom_call.1} parent=11 // pred_region
        _
      $region32: #{tpu_custom_call.1} parent=11 // pred_fallthru
        _
    $region12: #{tpu_custom_call.1} parent=5 // pred_fallthru
      _
    %p199 = scmp.lt.s32.totalorder %s12, 2
    // Predicated region
    $region33: #{tpu_custom_call.1} parent=5 // pred_check
      %p200 = pneg %p199
    $region34: #{tpu_custom_call.1} parent=5 // pred_check_branch
      %202 = sbr.rel (%p200) target = $region36
    $region35: #{tpu_custom_call.1} parent=5 // pred_region
      // Predicated region
      $region37: #{tpu_custom_call.1} parent=35 // pred_check
        %p203 = pneg %p32
      $region38: #{tpu_custom_call.1} parent=35 // pred_check_branch
        %205 = sbr.rel (%p203) target = $region40
      $region39: #{tpu_custom_call.1} parent=35 // pred_region
        %p206 = scmp.lt.s32.totalorder %s12, 1
        %s207 = scalar_select %p206, %s12, 1
        %s208 = smul.addr %s207, 2
        %s209 = smul.addr %s208, 4
        %s210 = scalar_lea.vmem %s0, %s209
      $region40: #{tpu_custom_call.1} parent=35 // pred_fallthru
        _
    $region36: #{tpu_custom_call.1} parent=5 // pred_fallthru
      _
    %p211 = scmp.le.s32.totalorder 1, %s12
    %p212 = scmp.lt.s32.totalorder %s12, 3
    %p213 = pnand %p211, %p212
    %p214 = pneg %p213
    // Predicated region
    $region41: #{tpu_custom_call.1} parent=5 // pred_check
      _
    $region42: #{tpu_custom_call.1} parent=5 // pred_check_branch
      %216 = sbr.rel (%p213) target = $region44
    $region43: #{tpu_custom_call.1} parent=5 // pred_region
      %s217 = ssub.s32 %s12, 1
      %p218 = scmp.lt.s32.totalorder %s17, 1
      %s219 = scalar_select %p218, %s17, 1
      %s220 = smul.addr %s219, 2
      %s221 = smul.addr %s220, 4
      %s222 = scalar_lea.vmem %s0, %s221
      %p223 = pneg %p38
      %p224 = pneg %p35
      %p225 = pneg %p59
      %p226 = pneg %p56
      %p227 = pneg %p80
      %p228 = pneg %p77
      %p229 = pneg %p101
      %p230 = pneg %p98
      %p231 = pneg %p122
      %p232 = pneg %p119
      %p233 = pneg %p143
      %p234 = pneg %p140
      %p235 = pneg %p169
      %p236 = pneg %p166
      %p237 = scmp.lt.s32.totalorder %s17, 1
      %s238 = scalar_select %p237, %s17, 1
      %s239 = smul.addr %s238, 2
      %s240 = smul.addr %s239, 4
      %s241 = scalar_lea.vmem %s6, %s240
      %p242 = scmp.lt.s32.totalorder %s17, 1
      %s243 = scalar_select %p242, %s17, 1
      %s244 = smul.addr %s243, 2
      %s245 = smul.addr %s244, 4
      %s246 = scalar_lea.vmem %s0, %s245
      %p247 = scmp.lt.s32.totalorder %s17, 1
      %s248 = scalar_select %p247, %s17, 1
      %s249 = smul.addr %s248, 2
      %s250 = smul.addr %s249, 4
      %s251 = scalar_lea.vmem %s6, %s250
      %v252 = vld [vmem:[%s5] ss:$2 sm:$0x3]
      %s253 = scalar_lea.vmem %s5, 1
      %v254 = vld [vmem:[%s253] ss:$2 sm:$0x3]
      %v255 = vld [vmem:[%s1] sm:$0xff]
      %v256 = vld [vmem:[%s1 + $0x8] sm:$0xff]
      %v257 = vld [vmem:[%s1 + $0x10] sm:$0xff]
      %v258 = vld [vmem:[%s1 + $0x18] sm:$0xff]
      %v259 = vld [vmem:[%s1 + $0x20] sm:$0xff]
      %v260 = vld [vmem:[%s1 + $0x28] sm:$0xff]
      %v261 = vld [vmem:[%s1 + $0x30] sm:$0xff]
      %v262 = vld [vmem:[%s1 + $0x38] sm:$0xff]
      %v263 = vld [vmem:[%s1 + $0x40] sm:$0xff]
      %v264 = vld [vmem:[%s1 + $0x48] sm:$0xff]
      %v265 = vld [vmem:[%s1 + $0x50] sm:$0xff]
      %v266 = vld [vmem:[%s1 + $0x58] sm:$0xff]
      %v267 = vld [vmem:[%s1 + $0x60] sm:$0xff]
      %v268 = vld [vmem:[%s1 + $0x68] sm:$0xff]
      %v269 = vld [vmem:[%s1 + $0x70] sm:$0xff]
      %v270 = vld [vmem:[%s1 + $0x78] sm:$0xff]
      %v271 = vld [vmem:[%s1 + $0x80] sm:$0xff]
      %v272 = vld [vmem:[%s1 + $0x88] sm:$0xff]
      %v273 = vld [vmem:[%s2] sm:$0xff]
      %v274 = vld [vmem:[%s2 + $0x8] sm:$0xff]
      %v275 = vld [vmem:[%s3] sm:$0x7]
      %v276 = vld [vmem:[%s3 + $0x4] sm:$0x7]
      %v277 = vld [vmem:[%s3 + $0x8] sm:$0x7]
      %v278 = vld [vmem:[%s3 + $0xc] sm:$0x7]
      %v279 = vld [vmem:[%s3 + $0x10] sm:$0x7]
      %v280 = vld [vmem:[%s3 + $0x14] sm:$0x7]
      %v281 = vld [vmem:[%s3 + $0x18] sm:$0x7]
      %v282 = vld [vmem:[%s3 + $0x1c] sm:$0x7]
      %v283 = vld [vmem:[%s3 + $0x20] sm:$0x7]
      %v284 = vld [vmem:[%s4] sm:$0x7]
      %v285 = vld [vmem:[%s246] sm:$0x77]
      %287 = vset.pattern.permute.xlu0 0
      %288 = vperm.xlu0 %287, %v273
      %v289 = vpop.permute.xlu0 %288
      %292 = vset.pattern.permute.xlu0 0
      %293 = vperm.xlu0 %292, %v274
      %v294 = vpop.permute.xlu0 %293
      %v297 = vcombine.high %v285, %v285
      %298 = vrot.lane.b32.xlu0 %v285, 17
      %v299 = vpop.permute.xlu0 %298
      %300 = vrot.lane.b32.xlu0 %v297, 17
      %v301 = vpop.permute.xlu0 %300
      %vm302 = vcmask 138240
      %v303 = vsel %vm302, %v299, %v301
      %v306 = vsel %vm302, 0.0, %v299
      %v308 = vlaneseq
      %v309 = vshrl.u32 %v308, 7
      %v310 = vsub.s32 0, %v309
      %v311 = vrot.slane %v252, %v310
      %v312 = vlaneseq
      %v313 = vshrl.u32 %v312, 7
      %v314 = vsub.s32 1, %v313
      %v315 = vrot.slane %v252, %v314
      %v318 = vmul.f32 %v306, %v311
      %v319 = vmul.f32 %v303, %v315
      %vm320 = vcmask 23552
      %v322 = vsel %vm320, %v255, 0
      %v325 = vsel %vm320, %v256, 0
      %vm327 = vcmask 1042432
      %v329 = vsel %vm327, %v318, 0
      %v332 = vsel %vm327, %v319, 0
      %334 = vmatprep.subr.mxu0 %v332
      %335 = vmatpush1.msra.mxu0 %v329
      %336 = vmatprep.subr.mxu0 0.0
      %337 = vmatpush1.msra.mxu0 0.0
      %338 = vmatprep.subr.mxu0 0.0
      %339 = vmatpush1.msra.mxu0 0.0
      %340 = vmatprep.subr.mxu0 0.0
      %341 = vmatpush1.msra.mxu0 0.0
      %342 = vmatprep.subr.mxu0 0.0
      %343 = vmatpush1.msra.mxu0 0.0
      %344 = vmatprep.subr.mxu0 0.0
      %345 = vmatpush1.msra.mxu0 0.0
      %346 = vmatprep.subr.mxu0 0.0
      %347 = vmatpush1.msra.mxu0 0.0
      %348 = vmatprep.subr.mxu0 0.0
      %349 = vmatpush1.msra.mxu0 0.0
      %350 = vmatprep.subr.mxu0 0.0
      %351 = vmatpush1.msra.mxu0 0.0
      %352 = vmatprep.subr.mxu0 0.0
      %353 = vmatpush1.msra.mxu0 0.0
      %354 = vmatprep.subr.mxu0 0.0
      %355 = vmatpush1.msra.mxu0 0.0
      %356 = vmatprep.subr.mxu0 0.0
      %357 = vmatpush1.msra.mxu0 0.0
      %358 = vmatprep.subr.mxu0 0.0
      %359 = vmatpush1.msra.mxu0 0.0
      %360 = vmatprep.subr.mxu0 0.0
      %361 = vmatpush1.msra.mxu0 0.0
      %362 = vmatprep.subr.mxu0 0.0
      %363 = vmatpush1.msra.mxu0 0.0
      %364 = vmatprep.subr.mxu0 0.0
      %365 = vmatpush1.msra.mxu0 0.0
      %366 = vmatprep.subr.mxu0 0.0
      %367 = vmatpush1.msra.mxu0 0.0
      %368 = vmatprep.subr.mxu0 0.0
      %369 = vmatpush1.msra.mxu0 0.0
      %370 = vmatprep.subr.mxu0 0.0
      %371 = vmatpush1.msra.mxu0 0.0
      %372 = vmatprep.subr.mxu0 0.0
      %373 = vmatpush1.msra.mxu0 0.0
      %374 = vmatprep.subr.mxu0 0.0
      %375 = vmatpush1.msra.mxu0 0.0
      %376 = vmatprep.subr.mxu0 0.0
      %377 = vmatpush1.msra.mxu0 0.0
      %378 = vmatprep.subr.mxu0 0.0
      %379 = vmatpush1.msra.mxu0 0.0
      %380 = vmatprep.subr.mxu0 0.0
      %381 = vmatpush1.msra.mxu0 0.0
      %382 = vmatprep.subr.mxu0 0.0
      %383 = vmatpush1.msra.mxu0 0.0
      %384 = vmatprep.subr.mxu0 0.0
      %385 = vmatpush1.msra.mxu0 0.0
      %386 = vmatprep.subr.mxu0 0.0
      %387 = vmatpush1.msra.mxu0 0.0
      %388 = vmatprep.subr.mxu0 0.0
      %389 = vmatpush1.msra.mxu0 0.0
      %390 = vmatprep.subr.mxu0 0.0
      %391 = vmatpush1.msra.mxu0 0.0
      %392 = vmatprep.subr.mxu0 0.0
      %393 = vmatpush1.msra.mxu0 0.0
      %394 = vmatprep.subr.mxu0 0.0
      %395 = vmatpush1.msra.mxu0 0.0
      %396 = vmatprep.subr.mxu0 0.0
      %397 = vmatpush1.msra.mxu0 0.0
      %398 = vmatprep.mubr.f32.mxu0 0.0
      %399 = vmatmul.mubr.f32.gmra.mrb[0].mxu0 %v322
      %v400 = vpop.f32.mrb[0].mxu0
      %v401 = vadd.f32 0.0, %v400
      %v402 = vpop.f32.mrb[0].mxu0
      %v403 = vadd.f32 0.0, %v402
      %404 = vmatprep.mubr.f32.mxu0 0.0
      %405 = vmatmul.mubr.f32.gmra.mrb[0].mxu0 %v325
      %v406 = vpop.f32.mrb[0].mxu0
      %v407 = vadd.f32 0.0, %v406
      %v408 = vpop.f32.mrb[0].mxu0
      %v409 = vadd.f32 0.0, %v408
      %410 = vdwg.mxu0
      %v411 = vadd.f32 %v289, %v401
      %v412 = vadd.f32 %v289, %v403
      %v413 = vadd.f32 %v294, %v407
      %v414 = vadd.f32 %v294, %v409
      %415 = vrot.lane.b32.xlu0 %v285, 16
      %v416 = vpop.permute.xlu0 %415
      %417 = vrot.lane.b32.xlu0 %v297, 16
      %v418 = vpop.permute.xlu0 %417
      %vm419 = vcmask 130048
      %v420 = vsel %vm419, %v416, %v418
      %v422 = vsel %vm419, 0.0, %v416
      %v424 = vsel %vm320, %v257, 0
      %v427 = vsel %vm320, %v258, 0
      %v430 = vsel %vm327, %v422, 0
      %v432 = vsel %vm327, %v420, 0
      %434 = vmatprep.subr.mxu0 %v432
      %435 = vmatpush1.msra.mxu0 %v430
      %436 = vmatprep.subr.mxu0 0.0
      %437 = vmatpush1.msra.mxu0 0.0
      %438 = vmatprep.subr.mxu0 0.0
      %439 = vmatpush1.msra.mxu0 0.0
      %440 = vmatprep.subr.mxu0 0.0
      %441 = vmatpush1.msra.mxu0 0.0
      %442 = vmatprep.subr.mxu0 0.0
      %443 = vmatpush1.msra.mxu0 0.0
      %444 = vmatprep.subr.mxu0 0.0
      %445 = vmatpush1.msra.mxu0 0.0
      %446 = vmatprep.subr.mxu0 0.0
      %447 = vmatpush1.msra.mxu0 0.0
      %448 = vmatprep.subr.mxu0 0.0
      %449 = vmatpush1.msra.mxu0 0.0
      %450 = vmatprep.subr.mxu0 0.0
      %451 = vmatpush1.msra.mxu0 0.0
      %452 = vmatprep.subr.mxu0 0.0
      %453 = vmatpush1.msra.mxu0 0.0
      %454 = vmatprep.subr.mxu0 0.0
      %455 = vmatpush1.msra.mxu0 0.0
      %456 = vmatprep.subr.mxu0 0.0
      %457 = vmatpush1.msra.mxu0 0.0
      %458 = vmatprep.subr.mxu0 0.0
      %459 = vmatpush1.msra.mxu0 0.0
      %460 = vmatprep.subr.mxu0 0.0
      %461 = vmatpush1.msra.mxu0 0.0
      %462 = vmatprep.subr.mxu0 0.0
      %463 = vmatpush1.msra.mxu0 0.0
      %464 = vmatprep.subr.mxu0 0.0
      %465 = vmatpush1.msra.mxu0 0.0
      %466 = vmatprep.subr.mxu0 0.0
      %467 = vmatpush1.msra.mxu0 0.0
      %468 = vmatprep.subr.mxu0 0.0
      %469 = vmatpush1.msra.mxu0 0.0
      %470 = vmatprep.subr.mxu0 0.0
      %471 = vmatpush1.msra.mxu0 0.0
      %472 = vmatprep.subr.mxu0 0.0
      %473 = vmatpush1.msra.mxu0 0.0
      %474 = vmatprep.subr.mxu0 0.0
      %475 = vmatpush1.msra.mxu0 0.0
      %476 = vmatprep.subr.mxu0 0.0
      %477 = vmatpush1.msra.mxu0 0.0
      %478 = vmatprep.subr.mxu0 0.0
      %479 = vmatpush1.msra.mxu0 0.0
      %480 = vmatprep.subr.mxu0 0.0
      %481 = vmatpush1.msra.mxu0 0.0
      %482 = vmatprep.subr.mxu0 0.0
      %483 = vmatpush1.msra.mxu0 0.0
      %484 = vmatprep.subr.mxu0 0.0
      %485 = vmatpush1.msra.mxu0 0.0
      %486 = vmatprep.subr.mxu0 0.0
      %487 = vmatpush1.msra.mxu0 0.0
      %488 = vmatprep.subr.mxu0 0.0
      %489 = vmatpush1.msra.mxu0 0.0
      %490 = vmatprep.subr.mxu0 0.0
      %491 = vmatpush1.msra.mxu0 0.0
      %492 = vmatprep.subr.mxu0 0.0
      %493 = vmatpush1.msra.mxu0 0.0
      %494 = vmatprep.subr.mxu0 0.0
      %495 = vmatpush1.msra.mxu0 0.0
      %496 = vmatprep.subr.mxu0 0.0
      %497 = vmatpush1.msra.mxu0 0.0
      %498 = vmatprep.mubr.f32.mxu0 0.0
      %499 = vmatmul.mubr.f32.gmra.mrb[0].mxu0 %v424
      %v500 = vpop.f32.mrb[0].mxu0
      %v501 = vadd.f32 0.0, %v500
      %v502 = vpop.f32.mrb[0].mxu0
      %v503 = vadd.f32 0.0, %v502
      %504 = vmatprep.mubr.f32.mxu0 0.0
      %505 = vmatmul.mubr.f32.gmra.mrb[0].mxu0 %v427
      %v506 = vpop.f32.mrb[0].mxu0
      %v507 = vadd.f32 0.0, %v506
      %v508 = vpop.f32.mrb[0].mxu0
      %v509 = vadd.f32 0.0, %v508
      %510 = vdwg.mxu0
      %v511 = vadd.f32 %v411, %v501
      %v512 = vadd.f32 %v412, %v503
      %v513 = vadd.f32 %v413, %v507
      %v514 = vadd.f32 %v414, %v509
      %515 = vrot.lane.b32.xlu0 %v285, 15
      %v516 = vpop.permute.xlu0 %515
      %517 = vrot.lane.b32.xlu0 %v297, 15
      %v518 = vpop.permute.xlu0 %517
      %vm519 = vcmask 121856
      %v520 = vsel %vm519, %v516, %v518
      %v523 = vsel %vm519, 0.0, %v516
      %v525 = vlaneseq
      %v526 = vshrl.u32 %v525, 7
      %v527 = vsub.s32 0, %v526
      %v528 = vrot.slane %v254, %v527
      %v529 = vlaneseq
      %v530 = vshrl.u32 %v529, 7
      %v531 = vsub.s32 1, %v530
      %v532 = vrot.slane %v254, %v531
      %v535 = vmul.f32 %v523, %v528
      %v536 = vmul.f32 %v520, %v532
      %v538 = vsel %vm320, %v259, 0
      %v541 = vsel %vm320, %v260, 0
      %v544 = vsel %vm327, %v535, 0
      %v547 = vsel %vm327, %v536, 0
      %549 = vmatprep.subr.mxu0 %v547
      %550 = vmatpush1.msra.mxu0 %v544
      %551 = vmatprep.subr.mxu0 0.0
      %552 = vmatpush1.msra.mxu0 0.0
      %553 = vmatprep.subr.mxu0 0.0
      %554 = vmatpush1.msra.mxu0 0.0
      %555 = vmatprep.subr.mxu0 0.0
      %556 = vmatpush1.msra.mxu0 0.0
      %557 = vmatprep.subr.mxu0 0.0
      %558 = vmatpush1.msra.mxu0 0.0
      %559 = vmatprep.subr.mxu0 0.0
      %560 = vmatpush1.msra.mxu0 0.0
      %561 = vmatprep.subr.mxu0 0.0
      %562 = vmatpush1.msra.mxu0 0.0
      %563 = vmatprep.subr.mxu0 0.0
      %564 = vmatpush1.msra.mxu0 0.0
      %565 = vmatprep.subr.mxu0 0.0
      %566 = vmatpush1.msra.mxu0 0.0
      %567 = vmatprep.subr.mxu0 0.0
      %568 = vmatpush1.msra.mxu0 0.0
      %569 = vmatprep.subr.mxu0 0.0
      %570 = vmatpush1.msra.mxu0 0.0
      %571 = vmatprep.subr.mxu0 0.0
      %572 = vmatpush1.msra.mxu0 0.0
      %573 = vmatprep.subr.mxu0 0.0
      %574 = vmatpush1.msra.mxu0 0.0
      %575 = vmatprep.subr.mxu0 0.0
      %576 = vmatpush1.msra.mxu0 0.0
      %577 = vmatprep.subr.mxu0 0.0
      %578 = vmatpush1.msra.mxu0 0.0
      %579 = vmatprep.subr.mxu0 0.0
      %580 = vmatpush1.msra.mxu0 0.0
      %581 = vmatprep.subr.mxu0 0.0
      %582 = vmatpush1.msra.mxu0 0.0
      %583 = vmatprep.subr.mxu0 0.0
      %584 = vmatpush1.msra.mxu0 0.0
      %585 = vmatprep.subr.mxu0 0.0
      %586 = vmatpush1.msra.mxu0 0.0
      %587 = vmatprep.subr.mxu0 0.0
      %588 = vmatpush1.msra.mxu0 0.0
      %589 = vmatprep.subr.mxu0 0.0
      %590 = vmatpush1.msra.mxu0 0.0
      %591 = vmatprep.subr.mxu0 0.0
      %592 = vmatpush1.msra.mxu0 0.0
      %593 = vmatprep.subr.mxu0 0.0
      %594 = vmatpush1.msra.mxu0 0.0
      %595 = vmatprep.subr.mxu0 0.0
      %596 = vmatpush1.msra.mxu0 0.0
      %597 = vmatprep.subr.mxu0 0.0
      %598 = vmatpush1.msra.mxu0 0.0
      %599 = vmatprep.subr.mxu0 0.0
      %600 = vmatpush1.msra.mxu0 0.0
      %601 = vmatprep.subr.mxu0 0.0
      %602 = vmatpush1.msra.mxu0 0.0
      %603 = vmatprep.subr.mxu0 0.0
      %604 = vmatpush1.msra.mxu0 0.0
      %605 = vmatprep.subr.mxu0 0.0
      %606 = vmatpush1.msra.mxu0 0.0
      %607 = vmatprep.subr.mxu0 0.0
      %608 = vmatpush1.msra.mxu0 0.0
      %609 = vmatprep.subr.mxu0 0.0
      %610 = vmatpush1.msra.mxu0 0.0
      %611 = vmatprep.subr.mxu0 0.0
      %612 = vmatpush1.msra.mxu0 0.0
      %613 = vmatprep.mubr.f32.mxu0 0.0
      %614 = vmatmul.mubr.f32.gmra.mrb[0].mxu0 %v538
      %v615 = vpop.f32.mrb[0].mxu0
      %v616 = vadd.f32 0.0, %v615
      %v617 = vpop.f32.mrb[0].mxu0
      %v618 = vadd.f32 0.0, %v617
      %619 = vmatprep.mubr.f32.mxu0 0.0
      %620 = vmatmul.mubr.f32.gmra.mrb[0].mxu0 %v541
      %v621 = vpop.f32.mrb[0].mxu0
      %v622 = vadd.f32 0.0, %v621
      %v623 = vpop.f32.mrb[0].mxu0
      %v624 = vadd.f32 0.0, %v623
      %625 = vdwg.mxu0
      %v626 = vadd.f32 %v511, %v616
      %v627 = vadd.f32 %v512, %v618
      %v628 = vadd.f32 %v513, %v622
      %v629 = vadd.f32 %v514, %v624
      %630 = vrot.lane.b32.xlu0 %v285, 1
      %v631 = vpop.permute.xlu0 %630
      %632 = vrot.lane.b32.xlu0 %v297, 1
      %v633 = vpop.permute.xlu0 %632
      %vm634 = vcmask 7168
      %v635 = vsel %vm634, %v631, %v633
      %v638 = vsel %vm634, 0.0, %v631
      %v639 = vmul.f32 %v638, %v311
      %v640 = vmul.f32 %v635, %v315
      %v642 = vsel %vm320, %v261, 0
      %v645 = vsel %vm320, %v262, 0
      %v648 = vsel %vm327, %v639, 0
      %v651 = vsel %vm327, %v640, 0
      %653 = vmatprep.subr.mxu0 %v651
      %654 = vmatpush1.msra.mxu0 %v648
      %655 = vmatprep.subr.mxu0 0.0
      %656 = vmatpush1.msra.mxu0 0.0
      %657 = vmatprep.subr.mxu0 0.0
      %658 = vmatpush1.msra.mxu0 0.0
      %659 = vmatprep.subr.mxu0 0.0
      %660 = vmatpush1.msra.mxu0 0.0
      %661 = vmatprep.subr.mxu0 0.0
      %662 = vmatpush1.msra.mxu0 0.0
      %663 = vmatprep.subr.mxu0 0.0
      %664 = vmatpush1.msra.mxu0 0.0
      %665 = vmatprep.subr.mxu0 0.0
      %666 = vmatpush1.msra.mxu0 0.0
      %667 = vmatprep.subr.mxu0 0.0
      %668 = vmatpush1.msra.mxu0 0.0
      %669 = vmatprep.subr.mxu0 0.0
      %670 = vmatpush1.msra.mxu0 0.0
      %671 = vmatprep.subr.mxu0 0.0
      %672 = vmatpush1.msra.mxu0 0.0
      %673 = vmatprep.subr.mxu0 0.0
      %674 = vmatpush1.msra.mxu0 0.0
      %675 = vmatprep.subr.mxu0 0.0
      %676 = vmatpush1.msra.mxu0 0.0
      %677 = vmatprep.subr.mxu0 0.0
      %678 = vmatpush1.msra.mxu0 0.0
      %679 = vmatprep.subr.mxu0 0.0
      %680 = vmatpush1.msra.mxu0 0.0
      %681 = vmatprep.subr.mxu0 0.0
      %682 = vmatpush1.msra.mxu0 0.0
      %683 = vmatprep.subr.mxu0 0.0
      %684 = vmatpush1.msra.mxu0 0.0
      %685 = vmatprep.subr.mxu0 0.0
      %686 = vmatpush1.msra.mxu0 0.0
      %687 = vmatprep.subr.mxu0 0.0
      %688 = vmatpush1.msra.mxu0 0.0
      %689 = vmatprep.subr.mxu0 0.0
      %690 = vmatpush1.msra.mxu0 0.0
      %691 = vmatprep.subr.mxu0 0.0
      %692 = vmatpush1.msra.mxu0 0.0
      %693 = vmatprep.subr.mxu0 0.0
      %694 = vmatpush1.msra.mxu0 0.0
      %695 = vmatprep.subr.mxu0 0.0
      %696 = vmatpush1.msra.mxu0 0.0
      %697 = vmatprep.subr.mxu0 0.0
      %698 = vmatpush1.msra.mxu0 0.0
      %699 = vmatprep.subr.mxu0 0.0
      %700 = vmatpush1.msra.mxu0 0.0
      %701 = vmatprep.subr.mxu0 0.0
      %702 = vmatpush1.msra.mxu0 0.0
      %703 = vmatprep.subr.mxu0 0.0
      %704 = vmatpush1.msra.mxu0 0.0
      %705 = vmatprep.subr.mxu0 0.0
      %706 = vmatpush1.msra.mxu0 0.0
      %707 = vmatprep.subr.mxu0 0.0
      %708 = vmatpush1.msra.mxu0 0.0
      %709 = vmatprep.subr.mxu0 0.0
      %710 = vmatpush1.msra.mxu0 0.0
      %711 = vmatprep.subr.mxu0 0.0
      %712 = vmatpush1.msra.mxu0 0.0
      %713 = vmatprep.subr.mxu0 0.0
      %714 = vmatpush1.msra.mxu0 0.0
      %715 = vmatprep.subr.mxu0 0.0
      %716 = vmatpush1.msra.mxu0 0.0
      %717 = vmatprep.mubr.f32.mxu0 0.0
      %718 = vmatmul.mubr.f32.gmra.mrb[0].mxu0 %v642
      %v719 = vpop.f32.mrb[0].mxu0
      %v720 = vadd.f32 0.0, %v719
      %v721 = vpop.f32.mrb[0].mxu0
      %v722 = vadd.f32 0.0, %v721
      %723 = vmatprep.mubr.f32.mxu0 0.0
      %724 = vmatmul.mubr.f32.gmra.mrb[0].mxu0 %v645
      %v725 = vpop.f32.mrb[0].mxu0
      %v726 = vadd.f32 0.0, %v725
      %v727 = vpop.f32.mrb[0].mxu0
      %v728 = vadd.f32 0.0, %v727
      %729 = vdwg.mxu0
      %v730 = vadd.f32 %v626, %v720
      %v731 = vadd.f32 %v627, %v722
      %v732 = vadd.f32 %v628, %v726
      %v733 = vadd.f32 %v629, %v728
      %v735 = vsel %vm320, %v263, 0
      %v738 = vsel %vm320, %v264, 0
      %v740 = vsel %vm327, %v285, 0
      %v742 = vsel %vm327, %v297, 0
      %744 = vmatprep.subr.mxu0 %v742
      %745 = vmatpush1.msra.mxu0 %v740
      %746 = vmatprep.subr.mxu0 0.0
      %747 = vmatpush1.msra.mxu0 0.0
      %748 = vmatprep.subr.mxu0 0.0
      %749 = vmatpush1.msra.mxu0 0.0
      %750 = vmatprep.subr.mxu0 0.0
      %751 = vmatpush1.msra.mxu0 0.0
      %752 = vmatprep.subr.mxu0 0.0
      %753 = vmatpush1.msra.mxu0 0.0
      %754 = vmatprep.subr.mxu0 0.0
      %755 = vmatpush1.msra.mxu0 0.0
      %756 = vmatprep.subr.mxu0 0.0
      %757 = vmatpush1.msra.mxu0 0.0
      %758 = vmatprep.subr.mxu0 0.0
      %759 = vmatpush1.msra.mxu0 0.0
      %760 = vmatprep.subr.mxu0 0.0
      %761 = vmatpush1.msra.mxu0 0.0
      %762 = vmatprep.subr.mxu0 0.0
      %763 = vmatpush1.msra.mxu0 0.0
      %764 = vmatprep.subr.mxu0 0.0
      %765 = vmatpush1.msra.mxu0 0.0
      %766 = vmatprep.subr.mxu0 0.0
      %767 = vmatpush1.msra.mxu0 0.0
      %768 = vmatprep.subr.mxu0 0.0
      %769 = vmatpush1.msra.mxu0 0.0
      %770 = vmatprep.subr.mxu0 0.0
      %771 = vmatpush1.msra.mxu0 0.0
      %772 = vmatprep.subr.mxu0 0.0
      %773 = vmatpush1.msra.mxu0 0.0
      %774 = vmatprep.subr.mxu0 0.0
      %775 = vmatpush1.msra.mxu0 0.0
      %776 = vmatprep.subr.mxu0 0.0
      %777 = vmatpush1.msra.mxu0 0.0
      %778 = vmatprep.subr.mxu0 0.0
      %779 = vmatpush1.msra.mxu0 0.0
      %780 = vmatprep.subr.mxu0 0.0
      %781 = vmatpush1.msra.mxu0 0.0
      %782 = vmatprep.subr.mxu0 0.0
      %783 = vmatpush1.msra.mxu0 0.0
      %784 = vmatprep.subr.mxu0 0.0
      %785 = vmatpush1.msra.mxu0 0.0
      %786 = vmatprep.subr.mxu0 0.0
      %787 = vmatpush1.msra.mxu0 0.0
      %788 = vmatprep.subr.mxu0 0.0
      %789 = vmatpush1.msra.mxu0 0.0
      %790 = vmatprep.subr.mxu0 0.0
      %791 = vmatpush1.msra.mxu0 0.0
      %792 = vmatprep.subr.mxu0 0.0
      %793 = vmatpush1.msra.mxu0 0.0
      %794 = vmatprep.subr.mxu0 0.0
      %795 = vmatpush1.msra.mxu0 0.0
      %796 = vmatprep.subr.mxu0 0.0
      %797 = vmatpush1.msra.mxu0 0.0
      %798 = vmatprep.subr.mxu0 0.0
      %799 = vmatpush1.msra.mxu0 0.0
      %800 = vmatprep.subr.mxu0 0.0
      %801 = vmatpush1.msra.mxu0 0.0
      %802 = vmatprep.subr.mxu0 0.0
      %803 = vmatpush1.msra.mxu0 0.0
      %804 = vmatprep.subr.mxu0 0.0
      %805 = vmatpush1.msra.mxu0 0.0
      %806 = vmatprep.subr.mxu0 0.0
      %807 = vmatpush1.msra.mxu0 0.0
      %808 = vmatprep.mubr.f32.mxu0 0.0
      %809 = vmatmul.mubr.f32.gmra.mrb[0].mxu0 %v735
      %v810 = vpop.f32.mrb[0].mxu0
      %v811 = vadd.f32 0.0, %v810
      %v812 = vpop.f32.mrb[0].mxu0
      %v813 = vadd.f32 0.0, %v812
      %814 = vmatprep.mubr.f32.mxu0 0.0
      %815 = vmatmul.mubr.f32.gmra.mrb[0].mxu0 %v738
      %v816 = vpop.f32.mrb[0].mxu0
      %v817 = vadd.f32 0.0, %v816
      %v818 = vpop.f32.mrb[0].mxu0
      %v819 = vadd.f32 0.0, %v818
      %820 = vdwg.mxu0
      %v821 = vadd.f32 %v730, %v811
      %v822 = vadd.f32 %v731, %v813
      %v823 = vadd.f32 %v732, %v817
      %v824 = vadd.f32 %v733, %v819
      %825 = vrot.lane.b32.xlu0 %v285, 127
      %v826 = vpop.permute.xlu0 %825
      %827 = vrot.lane.b32.xlu0 %v297, 127
      %v828 = vpop.permute.xlu0 %827
      %vm829 = vcmask 1039360
      %v830 = vsel %vm829, %v826, %v828
      %v833 = vsel %vm829, %v828, 0.0
      %v834 = vmul.f32 %v830, %v528
      %v835 = vmul.f32 %v833, %v532
      %v837 = vsel %vm320, %v265, 0
      %v840 = vsel %vm320, %v266, 0
      %v843 = vsel %vm327, %v834, 0
      %v846 = vsel %vm327, %v835, 0
      %848 = vmatprep.subr.mxu0 %v846
      %849 = vmatpush1.msra.mxu0 %v843
      %850 = vmatprep.subr.mxu0 0.0
      %851 = vmatpush1.msra.mxu0 0.0
      %852 = vmatprep.subr.mxu0 0.0
      %853 = vmatpush1.msra.mxu0 0.0
      %854 = vmatprep.subr.mxu0 0.0
      %855 = vmatpush1.msra.mxu0 0.0
      %856 = vmatprep.subr.mxu0 0.0
      %857 = vmatpush1.msra.mxu0 0.0
      %858 = vmatprep.subr.mxu0 0.0
      %859 = vmatpush1.msra.mxu0 0.0
      %860 = vmatprep.subr.mxu0 0.0
      %861 = vmatpush1.msra.mxu0 0.0
      %862 = vmatprep.subr.mxu0 0.0
      %863 = vmatpush1.msra.mxu0 0.0
      %864 = vmatprep.subr.mxu0 0.0
      %865 = vmatpush1.msra.mxu0 0.0
      %866 = vmatprep.subr.mxu0 0.0
      %867 = vmatpush1.msra.mxu0 0.0
      %868 = vmatprep.subr.mxu0 0.0
      %869 = vmatpush1.msra.mxu0 0.0
      %870 = vmatprep.subr.mxu0 0.0
      %871 = vmatpush1.msra.mxu0 0.0
      %872 = vmatprep.subr.mxu0 0.0
      %873 = vmatpush1.msra.mxu0 0.0
      %874 = vmatprep.subr.mxu0 0.0
      %875 = vmatpush1.msra.mxu0 0.0
      %876 = vmatprep.subr.mxu0 0.0
      %877 = vmatpush1.msra.mxu0 0.0
      %878 = vmatprep.subr.mxu0 0.0
      %879 = vmatpush1.msra.mxu0 0.0
      %880 = vmatprep.subr.mxu0 0.0
      %881 = vmatpush1.msra.mxu0 0.0
      %882 = vmatprep.subr.mxu0 0.0
      %883 = vmatpush1.msra.mxu0 0.0
      %884 = vmatprep.subr.mxu0 0.0
      %885 = vmatpush1.msra.mxu0 0.0
      %886 = vmatprep.subr.mxu0 0.0
      %887 = vmatpush1.msra.mxu0 0.0
      %888 = vmatprep.subr.mxu0 0.0
      %889 = vmatpush1.msra.mxu0 0.0
      %890 = vmatprep.subr.mxu0 0.0
      %891 = vmatpush1.msra.mxu0 0.0
      %892 = vmatprep.subr.mxu0 0.0
      %893 = vmatpush1.msra.mxu0 0.0
      %894 = vmatprep.subr.mxu0 0.0
      %895 = vmatpush1.msra.mxu0 0.0
      %896 = vmatprep.subr.mxu0 0.0
      %897 = vmatpush1.msra.mxu0 0.0
      %898 = vmatprep.subr.mxu0 0.0
      %899 = vmatpush1.msra.mxu0 0.0
      %900 = vmatprep.subr.mxu0 0.0
      %901 = vmatpush1.msra.mxu0 0.0
      %902 = vmatprep.subr.mxu0 0.0
      %903 = vmatpush1.msra.mxu0 0.0
      %904 = vmatprep.subr.mxu0 0.0
      %905 = vmatpush1.msra.mxu0 0.0
      %906 = vmatprep.subr.mxu0 0.0
      %907 = vmatpush1.msra.mxu0 0.0
      %908 = vmatprep.subr.mxu0 0.0
      %909 = vmatpush1.msra.mxu0 0.0
      %910 = vmatprep.subr.mxu0 0.0
      %911 = vmatpush1.msra.mxu0 0.0
      %912 = vmatprep.mubr.f32.mxu0 0.0
      %913 = vmatmul.mubr.f32.gmra.mrb[0].mxu0 %v837
      %v914 = vpop.f32.mrb[0].mxu0
      %v915 = vadd.f32 0.0, %v914
      %v916 = vpop.f32.mrb[0].mxu0
      %v917 = vadd.f32 0.0, %v916
      %918 = vmatprep.mubr.f32.mxu0 0.0
      %919 = vmatmul.mubr.f32.gmra.mrb[0].mxu0 %v840
      %v920 = vpop.f32.mrb[0].mxu0
      %v921 = vadd.f32 0.0, %v920
      %v922 = vpop.f32.mrb[0].mxu0
      %v923 = vadd.f32 0.0, %v922
      %924 = vdwg.mxu0
      %v925 = vadd.f32 %v821, %v915
      %v926 = vadd.f32 %v822, %v917
      %v927 = vadd.f32 %v823, %v921
      %v928 = vadd.f32 %v824, %v923
      %929 = vrot.lane.b32.xlu0 %v285, 113
      %v930 = vpop.permute.xlu0 %929
      %931 = vrot.lane.b32.xlu0 %v297, 113
      %v932 = vpop.permute.xlu0 %931
      %vm933 = vcmask 924672
      %v934 = vsel %vm933, %v930, %v932
      %v937 = vsel %vm933, %v932, 0.0
      %v938 = vmul.f32 %v934, %v311
      %v939 = vmul.f32 %v937, %v315
      %v941 = vsel %vm320, %v267, 0
      %v944 = vsel %vm320, %v268, 0
      %v947 = vsel %vm327, %v938, 0
      %v950 = vsel %vm327, %v939, 0
      %952 = vmatprep.subr.mxu0 %v950
      %953 = vmatpush1.msra.mxu0 %v947
      %954 = vmatprep.subr.mxu0 0.0
      %955 = vmatpush1.msra.mxu0 0.0
      %956 = vmatprep.subr.mxu0 0.0
      %957 = vmatpush1.msra.mxu0 0.0
      %958 = vmatprep.subr.mxu0 0.0
      %959 = vmatpush1.msra.mxu0 0.0
      %960 = vmatprep.subr.mxu0 0.0
      %961 = vmatpush1.msra.mxu0 0.0
      %962 = vmatprep.subr.mxu0 0.0
      %963 = vmatpush1.msra.mxu0 0.0
      %964 = vmatprep.subr.mxu0 0.0
      %965 = vmatpush1.msra.mxu0 0.0
      %966 = vmatprep.subr.mxu0 0.0
      %967 = vmatpush1.msra.mxu0 0.0
      %968 = vmatprep.subr.mxu0 0.0
      %969 = vmatpush1.msra.mxu0 0.0
      %970 = vmatprep.subr.mxu0 0.0
      %971 = vmatpush1.msra.mxu0 0.0
      %972 = vmatprep.subr.mxu0 0.0
      %973 = vmatpush1.msra.mxu0 0.0
      %974 = vmatprep.subr.mxu0 0.0
      %975 = vmatpush1.msra.mxu0 0.0
      %976 = vmatprep.subr.mxu0 0.0
      %977 = vmatpush1.msra.mxu0 0.0
      %978 = vmatprep.subr.mxu0 0.0
      %979 = vmatpush1.msra.mxu0 0.0
      %980 = vmatprep.subr.mxu0 0.0
      %981 = vmatpush1.msra.mxu0 0.0
      %982 = vmatprep.subr.mxu0 0.0
      %983 = vmatpush1.msra.mxu0 0.0
      %984 = vmatprep.subr.mxu0 0.0
      %985 = vmatpush1.msra.mxu0 0.0
      %986 = vmatprep.subr.mxu0 0.0
      %987 = vmatpush1.msra.mxu0 0.0
      %988 = vmatprep.subr.mxu0 0.0
      %989 = vmatpush1.msra.mxu0 0.0
      %990 = vmatprep.subr.mxu0 0.0
      %991 = vmatpush1.msra.mxu0 0.0
      %992 = vmatprep.subr.mxu0 0.0
      %993 = vmatpush1.msra.mxu0 0.0
      %994 = vmatprep.subr.mxu0 0.0
      %995 = vmatpush1.msra.mxu0 0.0
      %996 = vmatprep.subr.mxu0 0.0
      %997 = vmatpush1.msra.mxu0 0.0
      %998 = vmatprep.subr.mxu0 0.0
      %999 = vmatpush1.msra.mxu0 0.0
      %1000 = vmatprep.subr.mxu0 0.0
      %1001 = vmatpush1.msra.mxu0 0.0
      %1002 = vmatprep.subr.mxu0 0.0
      %1003 = vmatpush1.msra.mxu0 0.0
      %1004 = vmatprep.subr.mxu0 0.0
      %1005 = vmatpush1.msra.mxu0 0.0
      %1006 = vmatprep.subr.mxu0 0.0
      %1007 = vmatpush1.msra.mxu0 0.0
      %1008 = vmatprep.subr.mxu0 0.0
      %1009 = vmatpush1.msra.mxu0 0.0
      %1010 = vmatprep.subr.mxu0 0.0
      %1011 = vmatpush1.msra.mxu0 0.0
      %1012 = vmatprep.subr.mxu0 0.0
      %1013 = vmatpush1.msra.mxu0 0.0
      %1014 = vmatprep.subr.mxu0 0.0
      %1015 = vmatpush1.msra.mxu0 0.0
      %1016 = vmatprep.mubr.f32.mxu0 0.0
      %1017 = vmatmul.mubr.f32.gmra.mrb[0].mxu0 %v941
      %v1018 = vpop.f32.mrb[0].mxu0
      %v1019 = vadd.f32 0.0, %v1018
      %v1020 = vpop.f32.mrb[0].mxu0
      %v1021 = vadd.f32 0.0, %v1020
      %1022 = vmatprep.mubr.f32.mxu0 0.0
      %1023 = vmatmul.mubr.f32.gmra.mrb[0].mxu0 %v944
      %v1024 = vpop.f32.mrb[0].mxu0
      %v1025 = vadd.f32 0.0, %v1024
      %v1026 = vpop.f32.mrb[0].mxu0
      %v1027 = vadd.f32 0.0, %v1026
      %1028 = vdwg.mxu0
      %v1029 = vadd.f32 %v925, %v1019
      %v1030 = vadd.f32 %v926, %v1021
      %v1031 = vadd.f32 %v927, %v1025
      %v1032 = vadd.f32 %v928, %v1027
      %1033 = vrot.lane.b32.xlu0 %v285, 112
      %v1034 = vpop.permute.xlu0 %1033
      %1035 = vrot.lane.b32.xlu0 %v297, 112
      %v1036 = vpop.permute.xlu0 %1035
      %vm1037 = vcmask 916480
      %v1038 = vsel %vm1037, %v1034, %v1036
      %v1040 = vsel %vm1037, %v1036, 0.0
      %v1042 = vsel %vm320, %v269, 0
      %v1045 = vsel %vm320, %v270, 0
      %v1047 = vsel %vm327, %v1038, 0
      %v1050 = vsel %vm327, %v1040, 0
      %1052 = vmatprep.subr.mxu0 %v1050
      %1053 = vmatpush1.msra.mxu0 %v1047
      %1054 = vmatprep.subr.mxu0 0.0
      %1055 = vmatpush1.msra.mxu0 0.0
      %1056 = vmatprep.subr.mxu0 0.0
      %1057 = vmatpush1.msra.mxu0 0.0
      %1058 = vmatprep.subr.mxu0 0.0
      %1059 = vmatpush1.msra.mxu0 0.0
      %1060 = vmatprep.subr.mxu0 0.0
      %1061 = vmatpush1.msra.mxu0 0.0
      %1062 = vmatprep.subr.mxu0 0.0
      %1063 = vmatpush1.msra.mxu0 0.0
      %1064 = vmatprep.subr.mxu0 0.0
      %1065 = vmatpush1.msra.mxu0 0.0
      %1066 = vmatprep.subr.mxu0 0.0
      %1067 = vmatpush1.msra.mxu0 0.0
      %1068 = vmatprep.subr.mxu0 0.0
      %1069 = vmatpush1.msra.mxu0 0.0
      %1070 = vmatprep.subr.mxu0 0.0
      %1071 = vmatpush1.msra.mxu0 0.0
      %1072 = vmatprep.subr.mxu0 0.0
      %1073 = vmatpush1.msra.mxu0 0.0
      %1074 = vmatprep.subr.mxu0 0.0
      %1075 = vmatpush1.msra.mxu0 0.0
      %1076 = vmatprep.subr.mxu0 0.0
      %1077 = vmatpush1.msra.mxu0 0.0
      %1078 = vmatprep.subr.mxu0 0.0
      %1079 = vmatpush1.msra.mxu0 0.0
      %1080 = vmatprep.subr.mxu0 0.0
      %1081 = vmatpush1.msra.mxu0 0.0
      %1082 = vmatprep.subr.mxu0 0.0
      %1083 = vmatpush1.msra.mxu0 0.0
      %1084 = vmatprep.subr.mxu0 0.0
      %1085 = vmatpush1.msra.mxu0 0.0
      %1086 = vmatprep.subr.mxu0 0.0
      %1087 = vmatpush1.msra.mxu0 0.0
      %1088 = vmatprep.subr.mxu0 0.0
      %1089 = vmatpush1.msra.mxu0 0.0
      %1090 = vmatprep.subr.mxu0 0.0
      %1091 = vmatpush1.msra.mxu0 0.0
      %1092 = vmatprep.subr.mxu0 0.0
      %1093 = vmatpush1.msra.mxu0 0.0
      %1094 = vmatprep.subr.mxu0 0.0
      %1095 = vmatpush1.msra.mxu0 0.0
      %1096 = vmatprep.subr.mxu0 0.0
      %1097 = vmatpush1.msra.mxu0 0.0
      %1098 = vmatprep.subr.mxu0 0.0
      %1099 = vmatpush1.msra.mxu0 0.0
      %1100 = vmatprep.subr.mxu0 0.0
      %1101 = vmatpush1.msra.mxu0 0.0
      %1102 = vmatprep.subr.mxu0 0.0
      %1103 = vmatpush1.msra.mxu0 0.0
      %1104 = vmatprep.subr.mxu0 0.0
      %1105 = vmatpush1.msra.mxu0 0.0
      %1106 = vmatprep.subr.mxu0 0.0
      %1107 = vmatpush1.msra.mxu0 0.0
      %1108 = vmatprep.subr.mxu0 0.0
      %1109 = vmatpush1.msra.mxu0 0.0
      %1110 = vmatprep.subr.mxu0 0.0
      %1111 = vmatpush1.msra.mxu0 0.0
      %1112 = vmatprep.subr.mxu0 0.0
      %1113 = vmatpush1.msra.mxu0 0.0
      %1114 = vmatprep.subr.mxu0 0.0
      %1115 = vmatpush1.msra.mxu0 0.0
      %1116 = vmatprep.mubr.f32.mxu0 0.0
      %1117 = vmatmul.mubr.f32.gmra.mrb[0].mxu0 %v1042
      %v1118 = vpop.f32.mrb[0].mxu0
      %v1119 = vadd.f32 0.0, %v1118
      %v1120 = vpop.f32.mrb[0].mxu0
      %v1121 = vadd.f32 0.0, %v1120
      %1122 = vmatprep.mubr.f32.mxu0 0.0
      %1123 = vmatmul.mubr.f32.gmra.mrb[0].mxu0 %v1045
      %v1124 = vpop.f32.mrb[0].mxu0
      %v1125 = vadd.f32 0.0, %v1124
      %v1126 = vpop.f32.mrb[0].mxu0
      %v1127 = vadd.f32 0.0, %v1126
      %1128 = vdwg.mxu0
      %v1129 = vadd.f32 %v1029, %v1119
      %v1130 = vadd.f32 %v1030, %v1121
      %v1131 = vadd.f32 %v1031, %v1125
      %v1132 = vadd.f32 %v1032, %v1127
      %1133 = vrot.lane.b32.xlu0 %v285, 111
      %v1134 = vpop.permute.xlu0 %1133
      %1135 = vrot.lane.b32.xlu0 %v297, 111
      %v1136 = vpop.permute.xlu0 %1135
      %vm1137 = vcmask 908288
      %v1138 = vsel %vm1137, %v1134, %v1136
      %v1141 = vsel %vm1137, %v1136, 0.0
      %v1142 = vmul.f32 %v1138, %v528
      %v1143 = vmul.f32 %v1141, %v532
      %v1145 = vsel %vm320, %v271, 0
      %v1148 = vsel %vm320, %v272, 0
      %v1151 = vsel %vm327, %v1142, 0
      %v1154 = vsel %vm327, %v1143, 0
      %1156 = vmatprep.subr.mxu0 %v1154
      %1157 = vmatpush1.msra.mxu0 %v1151
      %1158 = vmatprep.subr.mxu0 0.0
      %1159 = vmatpush1.msra.mxu0 0.0
      %1160 = vmatprep.subr.mxu0 0.0
      %1161 = vmatpush1.msra.mxu0 0.0
      %1162 = vmatprep.subr.mxu0 0.0
      %1163 = vmatpush1.msra.mxu0 0.0
      %1164 = vmatprep.subr.mxu0 0.0
      %1165 = vmatpush1.msra.mxu0 0.0
      %1166 = vmatprep.subr.mxu0 0.0
      %1167 = vmatpush1.msra.mxu0 0.0
      %1168 = vmatprep.subr.mxu0 0.0
      %1169 = vmatpush1.msra.mxu0 0.0
      %1170 = vmatprep.subr.mxu0 0.0
      %1171 = vmatpush1.msra.mxu0 0.0
      %1172 = vmatprep.subr.mxu0 0.0
      %1173 = vmatpush1.msra.mxu0 0.0
      %1174 = vmatprep.subr.mxu0 0.0
      %1175 = vmatpush1.msra.mxu0 0.0
      %1176 = vmatprep.subr.mxu0 0.0
      %1177 = vmatpush1.msra.mxu0 0.0
      %1178 = vmatprep.subr.mxu0 0.0
      %1179 = vmatpush1.msra.mxu0 0.0
      %1180 = vmatprep.subr.mxu0 0.0
      %1181 = vmatpush1.msra.mxu0 0.0
      %1182 = vmatprep.subr.mxu0 0.0
      %1183 = vmatpush1.msra.mxu0 0.0
      %1184 = vmatprep.subr.mxu0 0.0
      %1185 = vmatpush1.msra.mxu0 0.0
      %1186 = vmatprep.subr.mxu0 0.0
      %1187 = vmatpush1.msra.mxu0 0.0
      %1188 = vmatprep.subr.mxu0 0.0
      %1189 = vmatpush1.msra.mxu0 0.0
      %1190 = vmatprep.subr.mxu0 0.0
      %1191 = vmatpush1.msra.mxu0 0.0
      %1192 = vmatprep.subr.mxu0 0.0
      %1193 = vmatpush1.msra.mxu0 0.0
      %1194 = vmatprep.subr.mxu0 0.0
      %1195 = vmatpush1.msra.mxu0 0.0
      %1196 = vmatprep.subr.mxu0 0.0
      %1197 = vmatpush1.msra.mxu0 0.0
      %1198 = vmatprep.subr.mxu0 0.0
      %1199 = vmatpush1.msra.mxu0 0.0
      %1200 = vmatprep.subr.mxu0 0.0
      %1201 = vmatpush1.msra.mxu0 0.0
      %1202 = vmatprep.subr.mxu0 0.0
      %1203 = vmatpush1.msra.mxu0 0.0
      %1204 = vmatprep.subr.mxu0 0.0
      %1205 = vmatpush1.msra.mxu0 0.0
      %1206 = vmatprep.subr.mxu0 0.0
      %1207 = vmatpush1.msra.mxu0 0.0
      %1208 = vmatprep.subr.mxu0 0.0
      %1209 = vmatpush1.msra.mxu0 0.0
      %1210 = vmatprep.subr.mxu0 0.0
      %1211 = vmatpush1.msra.mxu0 0.0
      %1212 = vmatprep.subr.mxu0 0.0
      %1213 = vmatpush1.msra.mxu0 0.0
      %1214 = vmatprep.subr.mxu0 0.0
      %1215 = vmatpush1.msra.mxu0 0.0
      %1216 = vmatprep.subr.mxu0 0.0
      %1217 = vmatpush1.msra.mxu0 0.0
      %1218 = vmatprep.subr.mxu0 0.0
      %1219 = vmatpush1.msra.mxu0 0.0
      %1220 = vmatprep.mubr.f32.mxu0 0.0
      %1221 = vmatmul.mubr.f32.gmra.mrb[0].mxu0 %v1145
      %v1222 = vpop.f32.mrb[0].mxu0
      %v1223 = vadd.f32 0.0, %v1222
      %v1224 = vpop.f32.mrb[0].mxu0
      %v1225 = vadd.f32 0.0, %v1224
      %1226 = vmatprep.mubr.f32.mxu0 0.0
      %1227 = vmatmul.mubr.f32.gmra.mrb[0].mxu0 %v1148
      %v1228 = vpop.f32.mrb[0].mxu0
      %v1229 = vadd.f32 0.0, %v1228
      %v1230 = vpop.f32.mrb[0].mxu0
      %v1231 = vadd.f32 0.0, %v1230
      %1232 = vdwg.mxu0
      %v1233 = vadd.f32 %v1129, %v1223
      %v1234 = vadd.f32 %v1130, %v1225
      %v1235 = vadd.f32 %v1131, %v1229
      %v1236 = vadd.f32 %v1132, %v1231
      %v1237 = vmax.f32 %v1233, 0.0
      %v1238 = vmax.f32 %v1234, 0.0
      %v1239 = vmax.f32 %v1235, 0.0
      %v1240 = vmax.f32 %v1236, 0.0
      %1242 = vset.pattern.permute.xlu0 0
      %1243 = vperm.xlu0 %1242, %v284
      %v1244 = vpop.permute.xlu0 %1243
      %1250 = vrot.lane.b32.xlu0 %v1237, 17
      %v1251 = vpop.permute.xlu0 %1250
      %1252 = vrot.lane.b32.xlu0 %v1238, 17
      %v1253 = vpop.permute.xlu0 %1252
      %1254 = vrot.lane.b32.xlu0 %v1239, 17
      %v1255 = vpop.permute.xlu0 %1254
      %1256 = vrot.lane.b32.xlu0 %v1240, 17
      %v1257 = vpop.permute.xlu0 %1256
      %v1258 = vsel %vm302, %v1251, %v1253
      %v1259 = vsel %vm302, %v1255, %v1257
      %v1264 = vsel %vm302, 0.0, %v1251
      %v1265 = vsel %vm302, 0.0, %v1255
      %v1266 = vmul.f32 %v1264, %v311
      %v1267 = vmul.f32 %v1258, %v315
      %v1268 = vmul.f32 %v1265, %v311
      %v1269 = vmul.f32 %v1259, %v315
      %v1271 = vsel %vm419, %v275, 0
      %1273 = vmatprep.subr.mxu0 %v1267
      %1274 = vmatpush1.msra.mxu0 %v1266
      %1275 = vmatprep.subr.mxu0 %v1269
      %1276 = vmatpush1.msra.mxu0 %v1268
      %1277 = vmatprep.subr.mxu0 0.0
      %1278 = vmatpush1.msra.mxu0 0.0
      %1279 = vmatprep.subr.mxu0 0.0
      %1280 = vmatpush1.msra.mxu0 0.0
      %1281 = vmatprep.subr.mxu0 0.0
      %1282 = vmatpush1.msra.mxu0 0.0
      %1283 = vmatprep.subr.mxu0 0.0
      %1284 = vmatpush1.msra.mxu0 0.0
      %1285 = vmatprep.subr.mxu0 0.0
      %1286 = vmatpush1.msra.mxu0 0.0
      %1287 = vmatprep.subr.mxu0 0.0
      %1288 = vmatpush1.msra.mxu0 0.0
      %1289 = vmatprep.subr.mxu0 0.0
      %1290 = vmatpush1.msra.mxu0 0.0
      %1291 = vmatprep.subr.mxu0 0.0
      %1292 = vmatpush1.msra.mxu0 0.0
      %1293 = vmatprep.subr.mxu0 0.0
      %1294 = vmatpush1.msra.mxu0 0.0
      %1295 = vmatprep.subr.mxu0 0.0
      %1296 = vmatpush1.msra.mxu0 0.0
      %1297 = vmatprep.subr.mxu0 0.0
      %1298 = vmatpush1.msra.mxu0 0.0
      %1299 = vmatprep.subr.mxu0 0.0
      %1300 = vmatpush1.msra.mxu0 0.0
      %1301 = vmatprep.subr.mxu0 0.0
      %1302 = vmatpush1.msra.mxu0 0.0
      %1303 = vmatprep.subr.mxu0 0.0
      %1304 = vmatpush1.msra.mxu0 0.0
      %1305 = vmatprep.subr.mxu0 0.0
      %1306 = vmatpush1.msra.mxu0 0.0
      %1307 = vmatprep.subr.mxu0 0.0
      %1308 = vmatpush1.msra.mxu0 0.0
      %1309 = vmatprep.subr.mxu0 0.0
      %1310 = vmatpush1.msra.mxu0 0.0
      %1311 = vmatprep.subr.mxu0 0.0
      %1312 = vmatpush1.msra.mxu0 0.0
      %1313 = vmatprep.subr.mxu0 0.0
      %1314 = vmatpush1.msra.mxu0 0.0
      %1315 = vmatprep.subr.mxu0 0.0
      %1316 = vmatpush1.msra.mxu0 0.0
      %1317 = vmatprep.subr.mxu0 0.0
      %1318 = vmatpush1.msra.mxu0 0.0
      %1319 = vmatprep.subr.mxu0 0.0
      %1320 = vmatpush1.msra.mxu0 0.0
      %1321 = vmatprep.subr.mxu0 0.0
      %1322 = vmatpush1.msra.mxu0 0.0
      %1323 = vmatprep.subr.mxu0 0.0
      %1324 = vmatpush1.msra.mxu0 0.0
      %1325 = vmatprep.subr.mxu0 0.0
      %1326 = vmatpush1.msra.mxu0 0.0
      %1327 = vmatprep.subr.mxu0 0.0
      %1328 = vmatpush1.msra.mxu0 0.0
      %1329 = vmatprep.subr.mxu0 0.0
      %1330 = vmatpush1.msra.mxu0 0.0
      %1331 = vmatprep.subr.mxu0 0.0
      %1332 = vmatpush1.msra.mxu0 0.0
      %1333 = vmatprep.subr.mxu0 0.0
      %1334 = vmatpush1.msra.mxu0 0.0
      %1335 = vmatprep.subr.mxu0 0.0
      %1336 = vmatpush1.msra.mxu0 0.0
      %1337 = vmatprep.mubr.f32.mxu0 0.0
      %1338 = vmatmul.mubr.f32.gmra.mrb[0].mxu0 %v1271
      %v1339 = vpop.f32.mrb[0].mxu0
      %v1340 = vadd.f32 0.0, %v1339
      %v1341 = vpop.f32.mrb[0].mxu0
      %v1342 = vadd.f32 0.0, %v1341
      %1343 = vdwg.mxu0
      %v1344 = vadd.f32 %v1244, %v1340
      %v1345 = vadd.f32 %v1244, %v1342
      %1346 = vrot.lane.b32.xlu0 %v1237, 16
      %v1347 = vpop.permute.xlu0 %1346
      %1348 = vrot.lane.b32.xlu0 %v1238, 16
      %v1349 = vpop.permute.xlu0 %1348
      %1350 = vrot.lane.b32.xlu0 %v1239, 16
      %v1351 = vpop.permute.xlu0 %1350
      %1352 = vrot.lane.b32.xlu0 %v1240, 16
      %v1353 = vpop.permute.xlu0 %1352
      %v1354 = vsel %vm419, %v1347, %v1349
      %v1355 = vsel %vm419, %v1351, %v1353
      %v1360 = vsel %vm419, 0.0, %v1347
      %v1361 = vsel %vm419, 0.0, %v1351
      %v1363 = vsel %vm419, %v276, 0
      %1365 = vmatprep.subr.mxu0 %v1354
      %1366 = vmatpush1.msra.mxu0 %v1360
      %1367 = vmatprep.subr.mxu0 %v1355
      %1368 = vmatpush1.msra.mxu0 %v1361
      %1369 = vmatprep.subr.mxu0 0.0
      %1370 = vmatpush1.msra.mxu0 0.0
      %1371 = vmatprep.subr.mxu0 0.0
      %1372 = vmatpush1.msra.mxu0 0.0
      %1373 = vmatprep.subr.mxu0 0.0
      %1374 = vmatpush1.msra.mxu0 0.0
      %1375 = vmatprep.subr.mxu0 0.0
      %1376 = vmatpush1.msra.mxu0 0.0
      %1377 = vmatprep.subr.mxu0 0.0
      %1378 = vmatpush1.msra.mxu0 0.0
      %1379 = vmatprep.subr.mxu0 0.0
      %1380 = vmatpush1.msra.mxu0 0.0
      %1381 = vmatprep.subr.mxu0 0.0
      %1382 = vmatpush1.msra.mxu0 0.0
      %1383 = vmatprep.subr.mxu0 0.0
      %1384 = vmatpush1.msra.mxu0 0.0
      %1385 = vmatprep.subr.mxu0 0.0
      %1386 = vmatpush1.msra.mxu0 0.0
      %1387 = vmatprep.subr.mxu0 0.0
      %1388 = vmatpush1.msra.mxu0 0.0
      %1389 = vmatprep.subr.mxu0 0.0
      %1390 = vmatpush1.msra.mxu0 0.0
      %1391 = vmatprep.subr.mxu0 0.0
      %1392 = vmatpush1.msra.mxu0 0.0
      %1393 = vmatprep.subr.mxu0 0.0
      %1394 = vmatpush1.msra.mxu0 0.0
      %1395 = vmatprep.subr.mxu0 0.0
      %1396 = vmatpush1.msra.mxu0 0.0
      %1397 = vmatprep.subr.mxu0 0.0
      %1398 = vmatpush1.msra.mxu0 0.0
      %1399 = vmatprep.subr.mxu0 0.0
      %1400 = vmatpush1.msra.mxu0 0.0
      %1401 = vmatprep.subr.mxu0 0.0
      %1402 = vmatpush1.msra.mxu0 0.0
      %1403 = vmatprep.subr.mxu0 0.0
      %1404 = vmatpush1.msra.mxu0 0.0
      %1405 = vmatprep.subr.mxu0 0.0
      %1406 = vmatpush1.msra.mxu0 0.0
      %1407 = vmatprep.subr.mxu0 0.0
      %1408 = vmatpush1.msra.mxu0 0.0
      %1409 = vmatprep.subr.mxu0 0.0
      %1410 = vmatpush1.msra.mxu0 0.0
      %1411 = vmatprep.subr.mxu0 0.0
      %1412 = vmatpush1.msra.mxu0 0.0
      %1413 = vmatprep.subr.mxu0 0.0
      %1414 = vmatpush1.msra.mxu0 0.0
      %1415 = vmatprep.subr.mxu0 0.0
      %1416 = vmatpush1.msra.mxu0 0.0
      %1417 = vmatprep.subr.mxu0 0.0
      %1418 = vmatpush1.msra.mxu0 0.0
      %1419 = vmatprep.subr.mxu0 0.0
      %1420 = vmatpush1.msra.mxu0 0.0
      %1421 = vmatprep.subr.mxu0 0.0
      %1422 = vmatpush1.msra.mxu0 0.0
      %1423 = vmatprep.subr.mxu0 0.0
      %1424 = vmatpush1.msra.mxu0 0.0
      %1425 = vmatprep.subr.mxu0 0.0
      %1426 = vmatpush1.msra.mxu0 0.0
      %1427 = vmatprep.subr.mxu0 0.0
      %1428 = vmatpush1.msra.mxu0 0.0
      %1429 = vmatprep.mubr.f32.mxu0 0.0
      %1430 = vmatmul.mubr.f32.gmra.mrb[0].mxu0 %v1363
      %v1431 = vpop.f32.mrb[0].mxu0
      %v1432 = vadd.f32 0.0, %v1431
      %v1433 = vpop.f32.mrb[0].mxu0
      %v1434 = vadd.f32 0.0, %v1433
      %1435 = vdwg.mxu0
      %v1436 = vadd.f32 %v1344, %v1432
      %v1437 = vadd.f32 %v1345, %v1434
      %1438 = vrot.lane.b32.xlu0 %v1237, 15
      %v1439 = vpop.permute.xlu0 %1438
      %1440 = vrot.lane.b32.xlu0 %v1238, 15
      %v1441 = vpop.permute.xlu0 %1440
      %1442 = vrot.lane.b32.xlu0 %v1239, 15
      %v1443 = vpop.permute.xlu0 %1442
      %1444 = vrot.lane.b32.xlu0 %v1240, 15
      %v1445 = vpop.permute.xlu0 %1444
      %v1446 = vsel %vm519, %v1439, %v1441
      %v1447 = vsel %vm519, %v1443, %v1445
      %v1452 = vsel %vm519, 0.0, %v1439
      %v1453 = vsel %vm519, 0.0, %v1443
      %v1454 = vmul.f32 %v1452, %v528
      %v1455 = vmul.f32 %v1446, %v532
      %v1456 = vmul.f32 %v1453, %v528
      %v1457 = vmul.f32 %v1447, %v532
      %v1459 = vsel %vm419, %v277, 0
      %1461 = vmatprep.subr.mxu0 %v1455
      %1462 = vmatpush1.msra.mxu0 %v1454
      %1463 = vmatprep.subr.mxu0 %v1457
      %1464 = vmatpush1.msra.mxu0 %v1456
      %1465 = vmatprep.subr.mxu0 0.0
      %1466 = vmatpush1.msra.mxu0 0.0
      %1467 = vmatprep.subr.mxu0 0.0
      %1468 = vmatpush1.msra.mxu0 0.0
      %1469 = vmatprep.subr.mxu0 0.0
      %1470 = vmatpush1.msra.mxu0 0.0
      %1471 = vmatprep.subr.mxu0 0.0
      %1472 = vmatpush1.msra.mxu0 0.0
      %1473 = vmatprep.subr.mxu0 0.0
      %1474 = vmatpush1.msra.mxu0 0.0
      %1475 = vmatprep.subr.mxu0 0.0
      %1476 = vmatpush1.msra.mxu0 0.0
      %1477 = vmatprep.subr.mxu0 0.0
      %1478 = vmatpush1.msra.mxu0 0.0
      %1479 = vmatprep.subr.mxu0 0.0
      %1480 = vmatpush1.msra.mxu0 0.0
      %1481 = vmatprep.subr.mxu0 0.0
      %1482 = vmatpush1.msra.mxu0 0.0
      %1483 = vmatprep.subr.mxu0 0.0
      %1484 = vmatpush1.msra.mxu0 0.0
      %1485 = vmatprep.subr.mxu0 0.0
      %1486 = vmatpush1.msra.mxu0 0.0
      %1487 = vmatprep.subr.mxu0 0.0
      %1488 = vmatpush1.msra.mxu0 0.0
      %1489 = vmatprep.subr.mxu0 0.0
      %1490 = vmatpush1.msra.mxu0 0.0
      %1491 = vmatprep.subr.mxu0 0.0
      %1492 = vmatpush1.msra.mxu0 0.0
      %1493 = vmatprep.subr.mxu0 0.0
      %1494 = vmatpush1.msra.mxu0 0.0
      %1495 = vmatprep.subr.mxu0 0.0
      %1496 = vmatpush1.msra.mxu0 0.0
      %1497 = vmatprep.subr.mxu0 0.0
      %1498 = vmatpush1.msra.mxu0 0.0
      %1499 = vmatprep.subr.mxu0 0.0
      %1500 = vmatpush1.msra.mxu0 0.0
      %1501 = vmatprep.subr.mxu0 0.0
      %1502 = vmatpush1.msra.mxu0 0.0
      %1503 = vmatprep.subr.mxu0 0.0
      %1504 = vmatpush1.msra.mxu0 0.0
      %1505 = vmatprep.subr.mxu0 0.0
      %1506 = vmatpush1.msra.mxu0 0.0
      %1507 = vmatprep.subr.mxu0 0.0
      %1508 = vmatpush1.msra.mxu0 0.0
      %1509 = vmatprep.subr.mxu0 0.0
      %1510 = vmatpush1.msra.mxu0 0.0
      %1511 = vmatprep.subr.mxu0 0.0
      %1512 = vmatpush1.msra.mxu0 0.0
      %1513 = vmatprep.subr.mxu0 0.0
      %1514 = vmatpush1.msra.mxu0 0.0
      %1515 = vmatprep.subr.mxu0 0.0
      %1516 = vmatpush1.msra.mxu0 0.0
      %1517 = vmatprep.subr.mxu0 0.0
      %1518 = vmatpush1.msra.mxu0 0.0
      %1519 = vmatprep.subr.mxu0 0.0
      %1520 = vmatpush1.msra.mxu0 0.0
      %1521 = vmatprep.subr.mxu0 0.0
      %1522 = vmatpush1.msra.mxu0 0.0
      %1523 = vmatprep.subr.mxu0 0.0
      %1524 = vmatpush1.msra.mxu0 0.0
      %1525 = vmatprep.mubr.f32.mxu0 0.0
      %1526 = vmatmul.mubr.f32.gmra.mrb[0].mxu0 %v1459
      %v1527 = vpop.f32.mrb[0].mxu0
      %v1528 = vadd.f32 0.0, %v1527
      %v1529 = vpop.f32.mrb[0].mxu0
      %v1530 = vadd.f32 0.0, %v1529
      %1531 = vdwg.mxu0
      %v1532 = vadd.f32 %v1436, %v1528
      %v1533 = vadd.f32 %v1437, %v1530
      %1534 = vrot.lane.b32.xlu0 %v1237, 1
      %v1535 = vpop.permute.xlu0 %1534
      %1536 = vrot.lane.b32.xlu0 %v1238, 1
      %v1537 = vpop.permute.xlu0 %1536
      %1538 = vrot.lane.b32.xlu0 %v1239, 1
      %v1539 = vpop.permute.xlu0 %1538
      %1540 = vrot.lane.b32.xlu0 %v1240, 1
      %v1541 = vpop.permute.xlu0 %1540
      %v1542 = vsel %vm634, %v1535, %v1537
      %v1543 = vsel %vm634, %v1539, %v1541
      %v1548 = vsel %vm634, 0.0, %v1535
      %v1549 = vsel %vm634, 0.0, %v1539
      %v1550 = vmul.f32 %v1548, %v311
      %v1551 = vmul.f32 %v1542, %v315
      %v1552 = vmul.f32 %v1549, %v311
      %v1553 = vmul.f32 %v1543, %v315
      %v1555 = vsel %vm419, %v278, 0
      %1557 = vmatprep.subr.mxu0 %v1551
      %1558 = vmatpush1.msra.mxu0 %v1550
      %1559 = vmatprep.subr.mxu0 %v1553
      %1560 = vmatpush1.msra.mxu0 %v1552
      %1561 = vmatprep.subr.mxu0 0.0
      %1562 = vmatpush1.msra.mxu0 0.0
      %1563 = vmatprep.subr.mxu0 0.0
      %1564 = vmatpush1.msra.mxu0 0.0
      %1565 = vmatprep.subr.mxu0 0.0
      %1566 = vmatpush1.msra.mxu0 0.0
      %1567 = vmatprep.subr.mxu0 0.0
      %1568 = vmatpush1.msra.mxu0 0.0
      %1569 = vmatprep.subr.mxu0 0.0
      %1570 = vmatpush1.msra.mxu0 0.0
      %1571 = vmatprep.subr.mxu0 0.0
      %1572 = vmatpush1.msra.mxu0 0.0
      %1573 = vmatprep.subr.mxu0 0.0
      %1574 = vmatpush1.msra.mxu0 0.0
      %1575 = vmatprep.subr.mxu0 0.0
      %1576 = vmatpush1.msra.mxu0 0.0
      %1577 = vmatprep.subr.mxu0 0.0
      %1578 = vmatpush1.msra.mxu0 0.0
      %1579 = vmatprep.subr.mxu0 0.0
      %1580 = vmatpush1.msra.mxu0 0.0
      %1581 = vmatprep.subr.mxu0 0.0
      %1582 = vmatpush1.msra.mxu0 0.0
      %1583 = vmatprep.subr.mxu0 0.0
      %1584 = vmatpush1.msra.mxu0 0.0
      %1585 = vmatprep.subr.mxu0 0.0
      %1586 = vmatpush1.msra.mxu0 0.0
      %1587 = vmatprep.subr.mxu0 0.0
      %1588 = vmatpush1.msra.mxu0 0.0
      %1589 = vmatprep.subr.mxu0 0.0
      %1590 = vmatpush1.msra.mxu0 0.0
      %1591 = vmatprep.subr.mxu0 0.0
      %1592 = vmatpush1.msra.mxu0 0.0
      %1593 = vmatprep.subr.mxu0 0.0
      %1594 = vmatpush1.msra.mxu0 0.0
      %1595 = vmatprep.subr.mxu0 0.0
      %1596 = vmatpush1.msra.mxu0 0.0
      %1597 = vmatprep.subr.mxu0 0.0
      %1598 = vmatpush1.msra.mxu0 0.0
      %1599 = vmatprep.subr.mxu0 0.0
      %1600 = vmatpush1.msra.mxu0 0.0
      %1601 = vmatprep.subr.mxu0 0.0
      %1602 = vmatpush1.msra.mxu0 0.0
      %1603 = vmatprep.subr.mxu0 0.0
      %1604 = vmatpush1.msra.mxu0 0.0
      %1605 = vmatprep.subr.mxu0 0.0
      %1606 = vmatpush1.msra.mxu0 0.0
      %1607 = vmatprep.subr.mxu0 0.0
      %1608 = vmatpush1.msra.mxu0 0.0
      %1609 = vmatprep.subr.mxu0 0.0
      %1610 = vmatpush1.msra.mxu0 0.0
      %1611 = vmatprep.subr.mxu0 0.0
      %1612 = vmatpush1.msra.mxu0 0.0
      %1613 = vmatprep.subr.mxu0 0.0
      %1614 = vmatpush1.msra.mxu0 0.0
      %1615 = vmatprep.subr.mxu0 0.0
      %1616 = vmatpush1.msra.mxu0 0.0
      %1617 = vmatprep.subr.mxu0 0.0
      %1618 = vmatpush1.msra.mxu0 0.0
      %1619 = vmatprep.subr.mxu0 0.0
      %1620 = vmatpush1.msra.mxu0 0.0
      %1621 = vmatprep.mubr.f32.mxu0 0.0
      %1622 = vmatmul.mubr.f32.gmra.mrb[0].mxu0 %v1555
      %v1623 = vpop.f32.mrb[0].mxu0
      %v1624 = vadd.f32 0.0, %v1623
      %v1625 = vpop.f32.mrb[0].mxu0
      %v1626 = vadd.f32 0.0, %v1625
      %1627 = vdwg.mxu0
      %v1628 = vadd.f32 %v1532, %v1624
      %v1629 = vadd.f32 %v1533, %v1626
      %v1631 = vsel %vm419, %v279, 0
      %1633 = vmatprep.subr.mxu0 %v1238
      %1634 = vmatpush1.msra.mxu0 %v1237
      %1635 = vmatprep.subr.mxu0 %v1240
      %1636 = vmatpush1.msra.mxu0 %v1239
      %1637 = vmatprep.subr.mxu0 0.0
      %1638 = vmatpush1.msra.mxu0 0.0
      %1639 = vmatprep.subr.mxu0 0.0
      %1640 = vmatpush1.msra.mxu0 0.0
      %1641 = vmatprep.subr.mxu0 0.0
      %1642 = vmatpush1.msra.mxu0 0.0
      %1643 = vmatprep.subr.mxu0 0.0
      %1644 = vmatpush1.msra.mxu0 0.0
      %1645 = vmatprep.subr.mxu0 0.0
      %1646 = vmatpush1.msra.mxu0 0.0
      %1647 = vmatprep.subr.mxu0 0.0
      %1648 = vmatpush1.msra.mxu0 0.0
      %1649 = vmatprep.subr.mxu0 0.0
      %1650 = vmatpush1.msra.mxu0 0.0
      %1651 = vmatprep.subr.mxu0 0.0
      %1652 = vmatpush1.msra.mxu0 0.0
      %1653 = vmatprep.subr.mxu0 0.0
      %1654 = vmatpush1.msra.mxu0 0.0
      %1655 = vmatprep.subr.mxu0 0.0
      %1656 = vmatpush1.msra.mxu0 0.0
      %1657 = vmatprep.subr.mxu0 0.0
      %1658 = vmatpush1.msra.mxu0 0.0
      %1659 = vmatprep.subr.mxu0 0.0
      %1660 = vmatpush1.msra.mxu0 0.0
      %1661 = vmatprep.subr.mxu0 0.0
      %1662 = vmatpush1.msra.mxu0 0.0
      %1663 = vmatprep.subr.mxu0 0.0
      %1664 = vmatpush1.msra.mxu0 0.0
      %1665 = vmatprep.subr.mxu0 0.0
      %1666 = vmatpush1.msra.mxu0 0.0
      %1667 = vmatprep.subr.mxu0 0.0
      %1668 = vmatpush1.msra.mxu0 0.0
      %1669 = vmatprep.subr.mxu0 0.0
      %1670 = vmatpush1.msra.mxu0 0.0
      %1671 = vmatprep.subr.mxu0 0.0
      %1672 = vmatpush1.msra.mxu0 0.0
      %1673 = vmatprep.subr.mxu0 0.0
      %1674 = vmatpush1.msra.mxu0 0.0
      %1675 = vmatprep.subr.mxu0 0.0
      %1676 = vmatpush1.msra.mxu0 0.0
      %1677 = vmatprep.subr.mxu0 0.0
      %1678 = vmatpush1.msra.mxu0 0.0
      %1679 = vmatprep.subr.mxu0 0.0
      %1680 = vmatpush1.msra.mxu0 0.0
      %1681 = vmatprep.subr.mxu0 0.0
      %1682 = vmatpush1.msra.mxu0 0.0
      %1683 = vmatprep.subr.mxu0 0.0
      %1684 = vmatpush1.msra.mxu0 0.0
      %1685 = vmatprep.subr.mxu0 0.0
      %1686 = vmatpush1.msra.mxu0 0.0
      %1687 = vmatprep.subr.mxu0 0.0
      %1688 = vmatpush1.msra.mxu0 0.0
      %1689 = vmatprep.subr.mxu0 0.0
      %1690 = vmatpush1.msra.mxu0 0.0
      %1691 = vmatprep.subr.mxu0 0.0
      %1692 = vmatpush1.msra.mxu0 0.0
      %1693 = vmatprep.subr.mxu0 0.0
      %1694 = vmatpush1.msra.mxu0 0.0
      %1695 = vmatprep.subr.mxu0 0.0
      %1696 = vmatpush1.msra.mxu0 0.0
      %1697 = vmatprep.mubr.f32.mxu0 0.0
      %1698 = vmatmul.mubr.f32.gmra.mrb[0].mxu0 %v1631
      %v1699 = vpop.f32.mrb[0].mxu0
      %v1700 = vadd.f32 0.0, %v1699
      %v1701 = vpop.f32.mrb[0].mxu0
      %v1702 = vadd.f32 0.0, %v1701
      %1703 = vdwg.mxu0
      %v1704 = vadd.f32 %v1628, %v1700
      %v1705 = vadd.f32 %v1629, %v1702
      %1706 = vrot.lane.b32.xlu0 %v1237, 127
      %v1707 = vpop.permute.xlu0 %1706
      %1708 = vrot.lane.b32.xlu0 %v1238, 127
      %v1709 = vpop.permute.xlu0 %1708
      %1710 = vrot.lane.b32.xlu0 %v1239, 127
      %v1711 = vpop.permute.xlu0 %1710
      %1712 = vrot.lane.b32.xlu0 %v1240, 127
      %v1713 = vpop.permute.xlu0 %1712
      %v1714 = vsel %vm829, %v1707, %v1709
      %v1715 = vsel %vm829, %v1711, %v1713
      %v1720 = vsel %vm829, %v1709, 0.0
      %v1721 = vsel %vm829, %v1713, 0.0
      %v1722 = vmul.f32 %v1714, %v528
      %v1723 = vmul.f32 %v1720, %v532
      %v1724 = vmul.f32 %v1715, %v528
      %v1725 = vmul.f32 %v1721, %v532
      %v1727 = vsel %vm419, %v280, 0
      %1729 = vmatprep.subr.mxu0 %v1723
      %1730 = vmatpush1.msra.mxu0 %v1722
      %1731 = vmatprep.subr.mxu0 %v1725
      %1732 = vmatpush1.msra.mxu0 %v1724
      %1733 = vmatprep.subr.mxu0 0.0
      %1734 = vmatpush1.msra.mxu0 0.0
      %1735 = vmatprep.subr.mxu0 0.0
      %1736 = vmatpush1.msra.mxu0 0.0
      %1737 = vmatprep.subr.mxu0 0.0
      %1738 = vmatpush1.msra.mxu0 0.0
      %1739 = vmatprep.subr.mxu0 0.0
      %1740 = vmatpush1.msra.mxu0 0.0
      %1741 = vmatprep.subr.mxu0 0.0
      %1742 = vmatpush1.msra.mxu0 0.0
      %1743 = vmatprep.subr.mxu0 0.0
      %1744 = vmatpush1.msra.mxu0 0.0
      %1745 = vmatprep.subr.mxu0 0.0
      %1746 = vmatpush1.msra.mxu0 0.0
      %1747 = vmatprep.subr.mxu0 0.0
      %1748 = vmatpush1.msra.mxu0 0.0
      %1749 = vmatprep.subr.mxu0 0.0
      %1750 = vmatpush1.msra.mxu0 0.0
      %1751 = vmatprep.subr.mxu0 0.0
      %1752 = vmatpush1.msra.mxu0 0.0
      %1753 = vmatprep.subr.mxu0 0.0
      %1754 = vmatpush1.msra.mxu0 0.0
      %1755 = vmatprep.subr.mxu0 0.0
      %1756 = vmatpush1.msra.mxu0 0.0
      %1757 = vmatprep.subr.mxu0 0.0
      %1758 = vmatpush1.msra.mxu0 0.0
      %1759 = vmatprep.subr.mxu0 0.0
      %1760 = vmatpush1.msra.mxu0 0.0
      %1761 = vmatprep.subr.mxu0 0.0
      %1762 = vmatpush1.msra.mxu0 0.0
      %1763 = vmatprep.subr.mxu0 0.0
      %1764 = vmatpush1.msra.mxu0 0.0
      %1765 = vmatprep.subr.mxu0 0.0
      %1766 = vmatpush1.msra.mxu0 0.0
      %1767 = vmatprep.subr.mxu0 0.0
      %1768 = vmatpush1.msra.mxu0 0.0
      %1769 = vmatprep.subr.mxu0 0.0
      %1770 = vmatpush1.msra.mxu0 0.0
      %1771 = vmatprep.subr.mxu0 0.0
      %1772 = vmatpush1.msra.mxu0 0.0
      %1773 = vmatprep.subr.mxu0 0.0
      %1774 = vmatpush1.msra.mxu0 0.0
      %1775 = vmatprep.subr.mxu0 0.0
      %1776 = vmatpush1.msra.mxu0 0.0
      %1777 = vmatprep.subr.mxu0 0.0
      %1778 = vmatpush1.msra.mxu0 0.0
      %1779 = vmatprep.subr.mxu0 0.0
      %1780 = vmatpush1.msra.mxu0 0.0
      %1781 = vmatprep.subr.mxu0 0.0
      %1782 = vmatpush1.msra.mxu0 0.0
      %1783 = vmatprep.subr.mxu0 0.0
      %1784 = vmatpush1.msra.mxu0 0.0
      %1785 = vmatprep.subr.mxu0 0.0
      %1786 = vmatpush1.msra.mxu0 0.0
      %1787 = vmatprep.subr.mxu0 0.0
      %1788 = vmatpush1.msra.mxu0 0.0
      %1789 = vmatprep.subr.mxu0 0.0
      %1790 = vmatpush1.msra.mxu0 0.0
      %1791 = vmatprep.subr.mxu0 0.0
      %1792 = vmatpush1.msra.mxu0 0.0
      %1793 = vmatprep.mubr.f32.mxu0 0.0
      %1794 = vmatmul.mubr.f32.gmra.mrb[0].mxu0 %v1727
      %v1795 = vpop.f32.mrb[0].mxu0
      %v1796 = vadd.f32 0.0, %v1795
      %v1797 = vpop.f32.mrb[0].mxu0
      %v1798 = vadd.f32 0.0, %v1797
      %1799 = vdwg.mxu0
      %v1800 = vadd.f32 %v1704, %v1796
      %v1801 = vadd.f32 %v1705, %v1798
      %1802 = vrot.lane.b32.xlu0 %v1237, 113
      %v1803 = vpop.permute.xlu0 %1802
      %1804 = vrot.lane.b32.xlu0 %v1238, 113
      %v1805 = vpop.permute.xlu0 %1804
      %1806 = vrot.lane.b32.xlu0 %v1239, 113
      %v1807 = vpop.permute.xlu0 %1806
      %1808 = vrot.lane.b32.xlu0 %v1240, 113
      %v1809 = vpop.permute.xlu0 %1808
      %v1810 = vsel %vm933, %v1803, %v1805
      %v1811 = vsel %vm933, %v1807, %v1809
      %v1816 = vsel %vm933, %v1805, 0.0
      %v1817 = vsel %vm933, %v1809, 0.0
      %v1818 = vmul.f32 %v1810, %v311
      %v1819 = vmul.f32 %v1816, %v315
      %v1820 = vmul.f32 %v1811, %v311
      %v1821 = vmul.f32 %v1817, %v315
      %v1823 = vsel %vm419, %v281, 0
      %1825 = vmatprep.subr.mxu0 %v1819
      %1826 = vmatpush1.msra.mxu0 %v1818
      %1827 = vmatprep.subr.mxu0 %v1821
      %1828 = vmatpush1.msra.mxu0 %v1820
      %1829 = vmatprep.subr.mxu0 0.0
      %1830 = vmatpush1.msra.mxu0 0.0
      %1831 = vmatprep.subr.mxu0 0.0
      %1832 = vmatpush1.msra.mxu0 0.0
      %1833 = vmatprep.subr.mxu0 0.0
      %1834 = vmatpush1.msra.mxu0 0.0
      %1835 = vmatprep.subr.mxu0 0.0
      %1836 = vmatpush1.msra.mxu0 0.0
      %1837 = vmatprep.subr.mxu0 0.0
      %1838 = vmatpush1.msra.mxu0 0.0
      %1839 = vmatprep.subr.mxu0 0.0
      %1840 = vmatpush1.msra.mxu0 0.0
      %1841 = vmatprep.subr.mxu0 0.0
      %1842 = vmatpush1.msra.mxu0 0.0
      %1843 = vmatprep.subr.mxu0 0.0
      %1844 = vmatpush1.msra.mxu0 0.0
      %1845 = vmatprep.subr.mxu0 0.0
      %1846 = vmatpush1.msra.mxu0 0.0
      %1847 = vmatprep.subr.mxu0 0.0
      %1848 = vmatpush1.msra.mxu0 0.0
      %1849 = vmatprep.subr.mxu0 0.0
      %1850 = vmatpush1.msra.mxu0 0.0
      %1851 = vmatprep.subr.mxu0 0.0
      %1852 = vmatpush1.msra.mxu0 0.0
      %1853 = vmatprep.subr.mxu0 0.0
      %1854 = vmatpush1.msra.mxu0 0.0
      %1855 = vmatprep.subr.mxu0 0.0
      %1856 = vmatpush1.msra.mxu0 0.0
      %1857 = vmatprep.subr.mxu0 0.0
      %1858 = vmatpush1.msra.mxu0 0.0
      %1859 = vmatprep.subr.mxu0 0.0
      %1860 = vmatpush1.msra.mxu0 0.0
      %1861 = vmatprep.subr.mxu0 0.0
      %1862 = vmatpush1.msra.mxu0 0.0
      %1863 = vmatprep.subr.mxu0 0.0
      %1864 = vmatpush1.msra.mxu0 0.0
      %1865 = vmatprep.subr.mxu0 0.0
      %1866 = vmatpush1.msra.mxu0 0.0
      %1867 = vmatprep.subr.mxu0 0.0
      %1868 = vmatpush1.msra.mxu0 0.0
      %1869 = vmatprep.subr.mxu0 0.0
      %1870 = vmatpush1.msra.mxu0 0.0
      %1871 = vmatprep.subr.mxu0 0.0
      %1872 = vmatpush1.msra.mxu0 0.0
      %1873 = vmatprep.subr.mxu0 0.0
      %1874 = vmatpush1.msra.mxu0 0.0
      %1875 = vmatprep.subr.mxu0 0.0
      %1876 = vmatpush1.msra.mxu0 0.0
      %1877 = vmatprep.subr.mxu0 0.0
      %1878 = vmatpush1.msra.mxu0 0.0
      %1879 = vmatprep.subr.mxu0 0.0
      %1880 = vmatpush1.msra.mxu0 0.0
      %1881 = vmatprep.subr.mxu0 0.0
      %1882 = vmatpush1.msra.mxu0 0.0
      %1883 = vmatprep.subr.mxu0 0.0
      %1884 = vmatpush1.msra.mxu0 0.0
      %1885 = vmatprep.subr.mxu0 0.0
      %1886 = vmatpush1.msra.mxu0 0.0
      %1887 = vmatprep.subr.mxu0 0.0
      %1888 = vmatpush1.msra.mxu0 0.0
      %1889 = vmatprep.mubr.f32.mxu0 0.0
      %1890 = vmatmul.mubr.f32.gmra.mrb[0].mxu0 %v1823
      %v1891 = vpop.f32.mrb[0].mxu0
      %v1892 = vadd.f32 0.0, %v1891
      %v1893 = vpop.f32.mrb[0].mxu0
      %v1894 = vadd.f32 0.0, %v1893
      %1895 = vdwg.mxu0
      %v1896 = vadd.f32 %v1800, %v1892
      %v1897 = vadd.f32 %v1801, %v1894
      %1898 = vrot.lane.b32.xlu0 %v1237, 112
      %v1899 = vpop.permute.xlu0 %1898
      %1900 = vrot.lane.b32.xlu0 %v1238, 112
      %v1901 = vpop.permute.xlu0 %1900
      %1902 = vrot.lane.b32.xlu0 %v1239, 112
      %v1903 = vpop.permute.xlu0 %1902
      %1904 = vrot.lane.b32.xlu0 %v1240, 112
      %v1905 = vpop.permute.xlu0 %1904
      %v1906 = vsel %vm1037, %v1899, %v1901
      %v1907 = vsel %vm1037, %v1903, %v1905
      %v1912 = vsel %vm1037, %v1901, 0.0
      %v1913 = vsel %vm1037, %v1905, 0.0
      %v1915 = vsel %vm419, %v282, 0
      %1917 = vmatprep.subr.mxu0 %v1912
      %1918 = vmatpush1.msra.mxu0 %v1906
      %1919 = vmatprep.subr.mxu0 %v1913
      %1920 = vmatpush1.msra.mxu0 %v1907
      %1921 = vmatprep.subr.mxu0 0.0
      %1922 = vmatpush1.msra.mxu0 0.0
      %1923 = vmatprep.subr.mxu0 0.0
      %1924 = vmatpush1.msra.mxu0 0.0
      %1925 = vmatprep.subr.mxu0 0.0
      %1926 = vmatpush1.msra.mxu0 0.0
      %1927 = vmatprep.subr.mxu0 0.0
      %1928 = vmatpush1.msra.mxu0 0.0
      %1929 = vmatprep.subr.mxu0 0.0
      %1930 = vmatpush1.msra.mxu0 0.0
      %1931 = vmatprep.subr.mxu0 0.0
      %1932 = vmatpush1.msra.mxu0 0.0
      %1933 = vmatprep.subr.mxu0 0.0
      %1934 = vmatpush1.msra.mxu0 0.0
      %1935 = vmatprep.subr.mxu0 0.0
      %1936 = vmatpush1.msra.mxu0 0.0
      %1937 = vmatprep.subr.mxu0 0.0
      %1938 = vmatpush1.msra.mxu0 0.0
      %1939 = vmatprep.subr.mxu0 0.0
      %1940 = vmatpush1.msra.mxu0 0.0
      %1941 = vmatprep.subr.mxu0 0.0
      %1942 = vmatpush1.msra.mxu0 0.0
      %1943 = vmatprep.subr.mxu0 0.0
      %1944 = vmatpush1.msra.mxu0 0.0
      %1945 = vmatprep.subr.mxu0 0.0
      %1946 = vmatpush1.msra.mxu0 0.0
      %1947 = vmatprep.subr.mxu0 0.0
      %1948 = vmatpush1.msra.mxu0 0.0
      %1949 = vmatprep.subr.mxu0 0.0
      %1950 = vmatpush1.msra.mxu0 0.0
      %1951 = vmatprep.subr.mxu0 0.0
      %1952 = vmatpush1.msra.mxu0 0.0
      %1953 = vmatprep.subr.mxu0 0.0
      %1954 = vmatpush1.msra.mxu0 0.0
      %1955 = vmatprep.subr.mxu0 0.0
      %1956 = vmatpush1.msra.mxu0 0.0
      %1957 = vmatprep.subr.mxu0 0.0
      %1958 = vmatpush1.msra.mxu0 0.0
      %1959 = vmatprep.subr.mxu0 0.0
      %1960 = vmatpush1.msra.mxu0 0.0
      %1961 = vmatprep.subr.mxu0 0.0
      %1962 = vmatpush1.msra.mxu0 0.0
      %1963 = vmatprep.subr.mxu0 0.0
      %1964 = vmatpush1.msra.mxu0 0.0
      %1965 = vmatprep.subr.mxu0 0.0
      %1966 = vmatpush1.msra.mxu0 0.0
      %1967 = vmatprep.subr.mxu0 0.0
      %1968 = vmatpush1.msra.mxu0 0.0
      %1969 = vmatprep.subr.mxu0 0.0
      %1970 = vmatpush1.msra.mxu0 0.0
      %1971 = vmatprep.subr.mxu0 0.0
      %1972 = vmatpush1.msra.mxu0 0.0
      %1973 = vmatprep.subr.mxu0 0.0
      %1974 = vmatpush1.msra.mxu0 0.0
      %1975 = vmatprep.subr.mxu0 0.0
      %1976 = vmatpush1.msra.mxu0 0.0
      %1977 = vmatprep.subr.mxu0 0.0
      %1978 = vmatpush1.msra.mxu0 0.0
      %1979 = vmatprep.subr.mxu0 0.0
      %1980 = vmatpush1.msra.mxu0 0.0
      %1981 = vmatprep.mubr.f32.mxu0 0.0
      %1982 = vmatmul.mubr.f32.gmra.mrb[0].mxu0 %v1915
      %v1983 = vpop.f32.mrb[0].mxu0
      %v1984 = vadd.f32 0.0, %v1983
      %v1985 = vpop.f32.mrb[0].mxu0
      %v1986 = vadd.f32 0.0, %v1985
      %1987 = vdwg.mxu0
      %v1988 = vadd.f32 %v1896, %v1984
      %v1989 = vadd.f32 %v1897, %v1986
      %1990 = vrot.lane.b32.xlu0 %v1237, 111
      %v1991 = vpop.permute.xlu0 %1990
      %1992 = vrot.lane.b32.xlu0 %v1238, 111
      %v1993 = vpop.permute.xlu0 %1992
      %1994 = vrot.lane.b32.xlu0 %v1239, 111
      %v1995 = vpop.permute.xlu0 %1994
      %1996 = vrot.lane.b32.xlu0 %v1240, 111
      %v1997 = vpop.permute.xlu0 %1996
      %v1998 = vsel %vm1137, %v1991, %v1993
      %v1999 = vsel %vm1137, %v1995, %v1997
      %v2004 = vsel %vm1137, %v1993, 0.0
      %v2005 = vsel %vm1137, %v1997, 0.0
      %v2006 = vmul.f32 %v1998, %v528
      %v2007 = vmul.f32 %v2004, %v532
      %v2008 = vmul.f32 %v1999, %v528
      %v2009 = vmul.f32 %v2005, %v532
      %v2011 = vsel %vm419, %v283, 0
      %2013 = vmatprep.subr.mxu0 %v2007
      %2014 = vmatpush1.msra.mxu0 %v2006
      %2015 = vmatprep.subr.mxu0 %v2009
      %2016 = vmatpush1.msra.mxu0 %v2008
      %2017 = vmatprep.subr.mxu0 0.0
      %2018 = vmatpush1.msra.mxu0 0.0
      %2019 = vmatprep.subr.mxu0 0.0
      %2020 = vmatpush1.msra.mxu0 0.0
      %2021 = vmatprep.subr.mxu0 0.0
      %2022 = vmatpush1.msra.mxu0 0.0
      %2023 = vmatprep.subr.mxu0 0.0
      %2024 = vmatpush1.msra.mxu0 0.0
      %2025 = vmatprep.subr.mxu0 0.0
      %2026 = vmatpush1.msra.mxu0 0.0
      %2027 = vmatprep.subr.mxu0 0.0
      %2028 = vmatpush1.msra.mxu0 0.0
      %2029 = vmatprep.subr.mxu0 0.0
      %2030 = vmatpush1.msra.mxu0 0.0
      %2031 = vmatprep.subr.mxu0 0.0
      %2032 = vmatpush1.msra.mxu0 0.0
      %2033 = vmatprep.subr.mxu0 0.0
      %2034 = vmatpush1.msra.mxu0 0.0
      %2035 = vmatprep.subr.mxu0 0.0
      %2036 = vmatpush1.msra.mxu0 0.0
      %2037 = vmatprep.subr.mxu0 0.0
      %2038 = vmatpush1.msra.mxu0 0.0
      %2039 = vmatprep.subr.mxu0 0.0
      %2040 = vmatpush1.msra.mxu0 0.0
      %2041 = vmatprep.subr.mxu0 0.0
      %2042 = vmatpush1.msra.mxu0 0.0
      %2043 = vmatprep.subr.mxu0 0.0
      %2044 = vmatpush1.msra.mxu0 0.0
      %2045 = vmatprep.subr.mxu0 0.0
      %2046 = vmatpush1.msra.mxu0 0.0
      %2047 = vmatprep.subr.mxu0 0.0
      %2048 = vmatpush1.msra.mxu0 0.0
      %2049 = vmatprep.subr.mxu0 0.0
      %2050 = vmatpush1.msra.mxu0 0.0
      %2051 = vmatprep.subr.mxu0 0.0
      %2052 = vmatpush1.msra.mxu0 0.0
      %2053 = vmatprep.subr.mxu0 0.0
      %2054 = vmatpush1.msra.mxu0 0.0
      %2055 = vmatprep.subr.mxu0 0.0
      %2056 = vmatpush1.msra.mxu0 0.0
      %2057 = vmatprep.subr.mxu0 0.0
      %2058 = vmatpush1.msra.mxu0 0.0
      %2059 = vmatprep.subr.mxu0 0.0
      %2060 = vmatpush1.msra.mxu0 0.0
      %2061 = vmatprep.subr.mxu0 0.0
      %2062 = vmatpush1.msra.mxu0 0.0
      %2063 = vmatprep.subr.mxu0 0.0
      %2064 = vmatpush1.msra.mxu0 0.0
      %2065 = vmatprep.subr.mxu0 0.0
      %2066 = vmatpush1.msra.mxu0 0.0
      %2067 = vmatprep.subr.mxu0 0.0
      %2068 = vmatpush1.msra.mxu0 0.0
      %2069 = vmatprep.subr.mxu0 0.0
      %2070 = vmatpush1.msra.mxu0 0.0
      %2071 = vmatprep.subr.mxu0 0.0
      %2072 = vmatpush1.msra.mxu0 0.0
      %2073 = vmatprep.subr.mxu0 0.0
      %2074 = vmatpush1.msra.mxu0 0.0
      %2075 = vmatprep.subr.mxu0 0.0
      %2076 = vmatpush1.msra.mxu0 0.0
      %2077 = vmatprep.mubr.f32.mxu0 0.0
      %2078 = vmatmul.mubr.f32.gmra.mrb[0].mxu0 %v2011
      %v2079 = vpop.f32.mrb[0].mxu0
      %v2080 = vadd.f32 0.0, %v2079
      %v2081 = vpop.f32.mrb[0].mxu0
      %v2082 = vadd.f32 0.0, %v2081
      %2083 = vdwg.mxu0
      %v2084 = vadd.f32 %v1988, %v2080
      %v2085 = vadd.f32 %v1989, %v2082
      %v2088 = vcombine.low %v2084, %v2085
      %2090 = vst [vmem:[%s251] sm:$0x77] %v2088
      %p2091 = scmp.lt.s32.totalorder %s17, 1
      %s2092 = scalar_select %p2091, %s17, 1
      %s2093 = smul.addr %s2092, 2
      %s2094 = smul.addr %s2093, 4
      %s2095 = scalar_lea.vmem %s6, %s2094
      // Predicated region
      $region45: #{tpu_custom_call.1} parent=43 // pred_check
        %p2096 = pneg %p166
      $region46: #{tpu_custom_call.1} parent=43 // pred_check_branch
        %2098 = sbr.rel (%p2096) target = $region48
      $region47: #{tpu_custom_call.1} parent=43 // pred_region
        _
      $region48: #{tpu_custom_call.1} parent=43 // pred_fallthru
        _
    $region44: #{tpu_custom_call.1} parent=5 // pred_fallthru
      _
    %p2099 = scmp.le.s32.totalorder 2, %s12
    // Predicated region
    $region49: #{tpu_custom_call.1} parent=5 // pred_check
      %p2100 = pneg %p2099
    $region50: #{tpu_custom_call.1} parent=5 // pred_check_branch
      %2102 = sbr.rel (%p2100) target = $region52
    $region51: #{tpu_custom_call.1} parent=5 // pred_region
      %s2103 = ssub.s32 %s12, 2
      // Predicated region
      $region53: #{tpu_custom_call.1} parent=51 // pred_check
        %p2104 = pneg %p172
      $region54: #{tpu_custom_call.1} parent=51 // pred_check_branch
        %2106 = sbr.rel (%p2104) target = $region56
      $region55: #{tpu_custom_call.1} parent=51 // pred_region
        %p2107 = scmp.lt.s32.totalorder %s18, 1
        %s2108 = scalar_select %p2107, %s18, 1
        %s2109 = smul.addr %s2108, 2
        %s2110 = smul.addr %s2109, 4
        %s2111 = scalar_lea.vmem %s6, %s2110
      $region56: #{tpu_custom_call.1} parent=51 // pred_fallthru
        _
    $region52: #{tpu_custom_call.1} parent=5 // pred_fallthru
      _
  $region6: #{tpu_custom_call.1} parent=0 // loop_footer
    %s16 = sadd.s32 1, %s12
  $region7: #{tpu_custom_call.1} parent=0 // loop_footer_branch
    %11 = sbr.rel target = $region3
  $region8: #{tpu_custom_call.1} parent=0 // loop_exit
    _

</llo_original>
